<compile_context>
chip_gen: v6e
topology: v6e:2x2x1
jax: 0.10.0
libtpu: 0.0.40
codegen_flags: <defaults>
</compile_context>

<pallas_src>
import functools

import jax
import jax.numpy as jnp
from jax.experimental import pallas as pl
from jax.experimental.pallas import tpu as pltpu

# ---- small, module-consistent sizes --------------------------------------
B, T, V = 2, 8, 50        # batch, sequence length, vocab size
E = 32                    # word embedding dim
H = 16                    # LSTM hidden per direction (BiLSTM feature dim = 2H)
D2 = 2 * H                # 32
G = 4 * D2                # fused (both-direction) gate width = 128 lanes
K = 4                     # number of basis weight matrices (BasisCust)
C = 5                     # number of classes
S = 4                     # number of stochastic weight samples


# ===========================================================================
# Single fused kernel: BiLSTM (both directions at once, unrolled over T),
# masked attention pooling, stochastic basis-cust head + softmax/mean.
# ===========================================================================
def _fused_forward_kernel(xcat_ref, mask_ref, wih_ref, whh_ref, bg_ref,
                          wa_ref, ba_ref, v_ref, wcomb_ref, bias_ref,
                          probs_ref, logits_ref, enc_scr, *,
                          seq_len, hidden, n_classes, n_samples):
    d2 = 2 * hidden
    bsz = mask_ref.shape[1]            # padded batch (>= 8, sublane aligned)

    # ---- hoisted (loop-invariant) weight loads; MXU weights arrive bf16 ----
    wih = wih_ref[...]                 # [2E, 8H] bf16 block-diag input->gate
    whh = whh_ref[...]                 # [2H, 8H] bf16 block-diag hidden->gate
    bg = bg_ref[...]                   # [1, 8H]  f32
    wa = wa_ref[...]                   # [2H, 2H] bf16
    ba = ba_ref[...]                   # [1, 2H]  f32
    v = v_ref[...]                     # [1, 2H]  f32
    wcomb = wcomb_ref[...]             # [2H, S*C] bf16 (coef already folded)
    bias = bias_ref[...]               # [1, S*C] f32 (bias tiled per sample)

    # ---- input->gate projection hoisted out of the recurrence --------------
    # xcat_ref rows (t*bsz + b): [x_fwd(t, b) || x_bwd(T-1-t, b)], bf16.
    gx = jnp.dot(xcat_ref[...], wih,
                 preferred_element_type=jnp.float32) + bg     # [T*Bp, 8H] f32

    # ---- fused bidirectional LSTM: ONE small MXU op per step ---------------
    # h_cat/c_cat = [fwd state (lanes 0:H) || bwd state (lanes H:2H)].
    h_cat = jnp.zeros((bsz, d2), jnp.float32)
    c_cat = jnp.zeros((bsz, d2), jnp.float32)
    h_hist = []
    for t in range(seq_len):
        gates = (gx[t * bsz:(t + 1) * bsz, :]
                 + jnp.dot(h_cat.astype(jnp.bfloat16), whh,
                           preferred_element_type=jnp.float32))   # [Bp, 128]
        sig = jax.nn.sigmoid(gates)          # one full-width EUP op
        i_g = sig[:, 0 * d2:1 * d2]
        f_g = sig[:, 1 * d2:2 * d2]
        o_g = sig[:, 3 * d2:4 * d2]
        g_g = jnp.tanh(gates[:, 2 * d2:3 * d2])
        c_cat = f_g * c_cat + i_g * g_g
        h_cat = o_g * jnp.tanh(c_cat)
        h_hist.append(h_cat)

    # ---- encoder rows: lane-mask select (fwd||bwd), stored to VMEM scratch -
    lane = jax.lax.broadcasted_iota(jnp.int32, (bsz, d2), 1)
    for t in range(seq_len):
        enc_scr[t] = jnp.where(lane < hidden, h_hist[t],
                               h_hist[seq_len - 1 - t])          # [Bp, 2H]
    enc3 = enc_scr[...]                                          # [T, Bp, 2H]
    enc_flat = enc3.reshape(seq_len * bsz, d2)                   # [T*Bp, 2H]

    # ---- attention: one flat matmul + vectorized masked softmax over T -----
    proj = jnp.tanh(jnp.dot(enc_flat.astype(jnp.bfloat16), wa,
                            preferred_element_type=jnp.float32) + ba)
    scores = jnp.sum((proj * v).reshape(seq_len, bsz, d2), axis=-1)  # [T, Bp]
    mask = mask_ref[...]                                             # [T, Bp]
    scores = jnp.where(mask > 0, scores, jnp.full_like(scores, -1e9))
    m = jnp.max(scores, axis=0, keepdims=True)
    e = jnp.exp(scores - m)
    alpha = e / jnp.sum(e, axis=0, keepdims=True)     # exact recip (off-chain)
    ctx = jnp.sum(alpha[:, :, None] * enc3, axis=0)               # [Bp, 2H]

    # ---- stochastic basis-cust head (coef pre-folded into wcomb) -----------
    logits = jnp.dot(ctx.astype(jnp.bfloat16), wcomb,
                     preferred_element_type=jnp.float32) + bias   # [Bp, S*C]
    logits_ref[...] = logits                          # single lane-dense store
    acc = jnp.zeros((bsz, n_classes), jnp.float32)
    for s in range(n_samples):
        ls = logits[:, s * n_classes:(s + 1) * n_classes]
        mm = jnp.max(ls, axis=-1, keepdims=True)
        ee = jnp.exp(ls - mm)
        acc = acc + ee * pl.reciprocal(
            jnp.sum(ee, axis=-1, keepdims=True), approx=True)
    probs_ref[...] = acc * (1.0 / n_samples)


def fused_forward(xcat_flat, mask_tb, wcomb, kp):
    rows, e2 = xcat_flat.shape
    tt, bpad = mask_tb.shape
    d2, gdim = kp["whh"].shape
    hh = d2 // 2
    cc = kp["bias"].shape[1]
    sc = wcomb.shape[1]
    ss = sc // cc
    bias_tiled = jnp.tile(kp["bias"], (1, ss))                    # [1, S*C]
    kernel = functools.partial(_fused_forward_kernel, seq_len=tt, hidden=hh,
                               n_classes=cc, n_samples=ss)
    probs, logits2d = pl.pallas_call(
        kernel,
        out_shape=(jax.ShapeDtypeStruct((bpad, cc), jnp.float32),
                   jax.ShapeDtypeStruct((bpad, sc), jnp.float32)),
        grid=(1,),
        in_specs=[
            pl.BlockSpec((rows, e2), lambda i: (0, 0)),       # xcat (bf16)
            pl.BlockSpec((tt, bpad), lambda i: (0, 0)),       # mask [T, Bpad]
            pl.BlockSpec((e2, gdim), lambda i: (0, 0)),       # fused W_ih bf16
            pl.BlockSpec((d2, gdim), lambda i: (0, 0)),       # fused W_hh bf16
            pl.BlockSpec((1, gdim), lambda i: (0, 0)),        # fused gate bias
            pl.BlockSpec((d2, d2), lambda i: (0, 0)),         # wa bf16
            pl.BlockSpec((1, d2), lambda i: (0, 0)),          # ba
            pl.BlockSpec((1, d2), lambda i: (0, 0)),          # v
            pl.BlockSpec((d2, sc), lambda i: (0, 0)),         # W_comb bf16
            pl.BlockSpec((1, sc), lambda i: (0, 0)),          # tiled bias
        ],
        out_specs=(pl.BlockSpec((bpad, cc), lambda i: (0, 0)),
                   pl.BlockSpec((bpad, sc), lambda i: (0, 0))),
        scratch_shapes=[pltpu.VMEM((tt, bpad, d2), jnp.float32)],
        compiler_params=pltpu.CompilerParams(
            dimension_semantics=("arbitrary",)),
    )(xcat_flat, mask_tb, kp["wih"], kp["whh"], kp["bg"], kp["wa"], kp["ba"],
      kp["v"], wcomb, bias_tiled)
    return probs, logits2d


# ===========================================================================
# Parameter init (deterministic, synthetic) + fusion into kernel layout.
# ===========================================================================
def init_params(key):
    ks = jax.random.split(key, 10)
    sc = 0.1
    p = {}
    p["word_em"] = jax.random.normal(ks[0], (V, E), jnp.float32) * sc
    # BiLSTM (PyTorch gate order i, f, g, o), stored [in, 4H] for x @ W
    p["wih_f"] = jax.random.normal(ks[1], (E, 4 * H), jnp.float32) * sc
    p["whh_f"] = jax.random.normal(ks[2], (H, 4 * H), jnp.float32) * sc
    p["b_f"] = jnp.zeros((1, 4 * H), jnp.float32)
    p["wih_b"] = jax.random.normal(ks[3], (E, 4 * H), jnp.float32) * sc
    p["whh_b"] = jax.random.normal(ks[4], (H, 4 * H), jnp.float32) * sc
    p["b_b"] = jnp.zeros((1, 4 * H), jnp.float32)
    # attention: score_t = v^T tanh(Wa x_t + ba)
    p["wa"] = jax.random.normal(ks[5], (D2, D2), jnp.float32) * sc
    p["ba"] = jnp.zeros((1, D2), jnp.float32)
    p["v"] = jax.random.normal(ks[6], (1, D2), jnp.float32) * sc
    # StochasticBasisCustLinear: K basis matrices + Gaussian coefficient params
    p["basis"] = jax.random.normal(ks[7], (K, D2, C), jnp.float32) * sc
    p["coef_mu"] = jax.random.normal(ks[8], (K,), jnp.float32) * sc
    p["coef_rho"] = jnp.full((K,), -2.0, jnp.float32)       # softplus -> std
    # BasicBias
    p["bias"] = jnp.zeros((1, C), jnp.float32)
    return p


def fuse_params(p):
    """Pack per-direction LSTM weights into block-diagonal [., 8H] matrices
    (bf16, kernel-ready); keep the basis unfused so the per-call coefficient
    samples can be folded into it in the wrapper."""
    Ee = p["wih_f"].shape[0]
    Hh = p["whh_f"].shape[0]

    def gate_block(wf, wb, rows):
        top = jnp.concatenate([wf, jnp.zeros((rows, Hh), jnp.float32)], axis=1)
        bot = jnp.concatenate([jnp.zeros((rows, Hh), jnp.float32), wb], axis=1)
        return jnp.concatenate([top, bot], axis=0)          # block-diag [2r, 2H]

    wih_blocks, whh_blocks, bg_blocks = [], [], []
    for gdx in range(4):                                    # gate order i,f,g,o
        sl = slice(gdx * Hh, (gdx + 1) * Hh)
        wih_blocks.append(gate_block(p["wih_f"][:, sl], p["wih_b"][:, sl], Ee))
        whh_blocks.append(gate_block(p["whh_f"][:, sl], p["whh_b"][:, sl], Hh))
        bg_blocks.append(jnp.concatenate([p["b_f"][:, sl], p["b_b"][:, sl]],
                                         axis=1))
    return {
        "word_em": p["word_em"],
        "wih": jnp.concatenate(wih_blocks, axis=1).astype(jnp.bfloat16),
        "whh": jnp.concatenate(whh_blocks, axis=1).astype(jnp.bfloat16),
        "bg": jnp.concatenate(bg_blocks, axis=1),           # [1, 8H] f32
        "wa": p["wa"].astype(jnp.bfloat16),
        "ba": p["ba"], "v": p["v"],
        "basis": p["basis"],                                # [K, 2H, C] f32
        "coef_mu": p["coef_mu"], "coef_rho": p["coef_rho"],
        "bias": p["bias"],                                  # [1, C] f32
    }


# ===========================================================================
# End-to-end forward (embedding gather, batch padding, input layout and the
# coefficient sampling/folding are plain-JAX glue; everything else is the
# single fused Pallas kernel).
# ===========================================================================
def stochastic_classifier_forward(kparams, review, length, mask, key,
                                  training=True):
    del length  # TODO(synk): original BiLSTM uses pack_padded_sequence; here the
    # full padded sequence is processed and padding is handled by the attention mask.
    bsz, tt = review.shape
    bpad = max(8, -(-bsz // 8) * 8)               # pad batch to sublane tile
    ee = kparams["word_em"].shape[1]

    x = jnp.take(kparams["word_em"], review, axis=0)          # [B, T, E]
    x = jnp.pad(x, ((0, bpad - bsz), (0, 0), (0, 0)))         # [Bp, T, E]
    x_tbe = jnp.transpose(x, (1, 0, 2))                       # [T, Bp, E]
    # pre-concat fwd / time-reversed inputs -> one bf16 slab for the kernel
    xcat = jnp.concatenate([x_tbe, x_tbe[::-1]], axis=-1)     # [T, Bp, 2E]
    xcat_flat = xcat.reshape(tt * bpad, 2 * ee).astype(jnp.bfloat16)
    mask_p = jnp.pad(mask.astype(jnp.float32), ((0, bpad - bsz), (0, 0)),
                     constant_values=1.0)
    mask_tb = mask_p.T                                        # [T, Bp]

    # stochastic coefficient sampling: coef_s = softmax(mu + eps * softplus(rho))
    # TODO(synk): original derives coefficient mean/std from customer metadata via
    # key-query attention (class not provided); synthesized as global Gaussian params.
    eps = jax.random.normal(key, (S, kparams["coef_mu"].shape[0]), jnp.float32)
    coef_logits = (kparams["coef_mu"][None, :]
                   + eps * jax.nn.softplus(kparams["coef_rho"])[None, :])
    coef = jax.nn.softmax(coef_logits, axis=-1)               # [S, K]
    # fold sampled coefficients into the basis -> one head matmul in-kernel
    d2 = kparams["basis"].shape[1]
    wcomb = jnp.einsum("sk,kdc->dsc", coef,
                       kparams["basis"]).reshape(d2, -1).astype(jnp.bfloat16)

    probs_p, logits_p = fused_forward(xcat_flat, mask_tb, wcomb, kparams)
    probs = probs_p[:bsz]                                     # [B, C]
    logits = logits_p[:bsz].reshape(bsz, S, -1)               # [B, S, C]
    if training:
        return probs, logits                                  # matches nn.Module
    return probs


if __name__ == "__main__":
    key = jax.random.PRNGKey(0)
    pkey, dkey, skey = jax.random.split(key, 3)
    params = init_params(pkey)
    kparams = fuse_params(params)

    review = jax.random.randint(dkey, (B, T), 0, V, dtype=jnp.int32)
    length = jnp.full((B,), T, dtype=jnp.int32)
    mask = jnp.ones((B, T), dtype=jnp.float32)

    fwd = jax.jit(stochastic_classifier_forward, static_argnames=("training",))
    probs, logits = fwd(kparams, review, length, mask, skey, training=True)
    jax.block_until_ready((probs, logits))

    assert probs.shape == (B, C), probs.shape
    assert logits.shape == (B, S, C), logits.shape
    # each probability row is a mean of S softmaxes -> sums to ~1
    # (tolerance 2e-3: output softmax denominators use approx reciprocal on EUP)
    assert bool(jnp.all(jnp.abs(jnp.sum(probs, axis=-1) - 1.0) < 2e-3))
    print("KERNEL_OK")
</pallas_src>

<mosaic_0001>
module attributes {stable_mosaic.version = 11 : i64} {
  func.func @_fused_forward_kernel(%arg0: i32, %arg1: memref<64x64xbf16, #tpu.memory_space<vmem>>, %arg2: memref<8x8xf32, #tpu.memory_space<vmem>>, %arg3: memref<64x128xbf16, #tpu.memory_space<vmem>>, %arg4: memref<32x128xbf16, #tpu.memory_space<vmem>>, %arg5: memref<1x128xf32, #tpu.memory_space<vmem>>, %arg6: memref<32x32xbf16, #tpu.memory_space<vmem>>, %arg7: memref<1x32xf32, #tpu.memory_space<vmem>>, %arg8: memref<1x32xf32, #tpu.memory_space<vmem>>, %arg9: memref<32x20xbf16, #tpu.memory_space<vmem>>, %arg10: memref<1x20xf32, #tpu.memory_space<vmem>>, %arg11: memref<8x5xf32, #tpu.memory_space<vmem>>, %arg12: memref<8x20xf32, #tpu.memory_space<vmem>>, %arg13: memref<8x8x32xf32, #tpu.memory_space<vmem>>) attributes {dimension_semantics = [#tpu.dimension_semantics<arbitrary>], iteration_bounds = array<i64: 1>, scalar_prefetch = 0 : i64, scratch_operands = 1 : i64, tpu.core_type = #tpu.core_type<tc>, window_params = [{pipeline_mode = #tpu.pipeline_mode<synchronous>, transform_indices = @transform_0, window_bounds = array<i64: 64, 64>}, {pipeline_mode = #tpu.pipeline_mode<synchronous>, transform_indices = @transform_1, window_bounds = array<i64: 8, 8>}, {pipeline_mode = #tpu.pipeline_mode<synchronous>, transform_indices = @transform_2, window_bounds = array<i64: 64, 128>}, {pipeline_mode = #tpu.pipeline_mode<synchronous>, transform_indices = @transform_3, window_bounds = array<i64: 32, 128>}, {pipeline_mode = #tpu.pipeline_mode<synchronous>, transform_indices = @transform_4, window_bounds = array<i64: 1, 128>}, {pipeline_mode = #tpu.pipeline_mode<synchronous>, transform_indices = @transform_5, window_bounds = array<i64: 32, 32>}, {pipeline_mode = #tpu.pipeline_mode<synchronous>, transform_indices = @transform_6, window_bounds = array<i64: 1, 32>}, {pipeline_mode = #tpu.pipeline_mode<synchronous>, transform_indices = @transform_7, window_bounds = array<i64: 1, 32>}, {pipeline_mode = #tpu.pipeline_mode<synchronous>, transform_indices = @transform_8, window_bounds = array<i64: 32, 20>}, {pipeline_mode = #tpu.pipeline_mode<synchronous>, transform_indices = @transform_9, window_bounds = array<i64: 1, 20>}, {pipeline_mode = #tpu.pipeline_mode<synchronous>, transform_indices = @transform_10, window_bounds = array<i64: 8, 5>}, {pipeline_mode = #tpu.pipeline_mode<synchronous>, transform_indices = @transform_11, window_bounds = array<i64: 8, 20>}]} {
    %c0 = arith.constant 0 : index
    %c0_0 = arith.constant 0 : index
    %0 = vector.load %arg3[%c0, %c0_0] : memref<64x128xbf16, #tpu.memory_space<vmem>>, vector<64x128xbf16>
    %c0_1 = arith.constant 0 : index
    %c0_2 = arith.constant 0 : index
    %1 = vector.load %arg4[%c0_1, %c0_2] : memref<32x128xbf16, #tpu.memory_space<vmem>>, vector<32x128xbf16>
    %c0_3 = arith.constant 0 : index
    %c0_4 = arith.constant 0 : index
    %2 = vector.load %arg5[%c0_3, %c0_4] : memref<1x128xf32, #tpu.memory_space<vmem>>, vector<1x128xf32>
    %c0_5 = arith.constant 0 : index
    %c0_6 = arith.constant 0 : index
    %3 = vector.load %arg6[%c0_5, %c0_6] : memref<32x32xbf16, #tpu.memory_space<vmem>>, vector<32x32xbf16>
    %c0_7 = arith.constant 0 : index
    %c0_8 = arith.constant 0 : index
    %4 = vector.load %arg7[%c0_7, %c0_8] : memref<1x32xf32, #tpu.memory_space<vmem>>, vector<1x32xf32>
    %c0_9 = arith.constant 0 : index
    %c0_10 = arith.constant 0 : index
    %5 = vector.load %arg8[%c0_9, %c0_10] : memref<1x32xf32, #tpu.memory_space<vmem>>, vector<1x32xf32>
    %c0_11 = arith.constant 0 : index
    %c0_12 = arith.constant 0 : index
    %6 = vector.load %arg9[%c0_11, %c0_12] : memref<32x20xbf16, #tpu.memory_space<vmem>>, vector<32x20xbf16>
    %c0_13 = arith.constant 0 : index
    %c0_14 = arith.constant 0 : index
    %7 = vector.load %arg10[%c0_13, %c0_14] : memref<1x20xf32, #tpu.memory_space<vmem>>, vector<1x20xf32>
    %c0_15 = arith.constant 0 : index
    %c0_16 = arith.constant 0 : index
    %8 = vector.load %arg1[%c0_15, %c0_16] : memref<64x64xbf16, #tpu.memory_space<vmem>>, vector<64x64xbf16>
    %cst = arith.constant dense<0.000000e+00> : vector<64x128xf32>
    %9 = tpu.matmul %8, %0, %cst {dimension_numbers = #tpu.dot_dimension_numbers<[1], [0], [0], [1], [0, 0, 1, 1], [], []>} : vector<64x64xbf16>, vector<64x128xbf16>, vector<64x128xf32> -> vector<64x128xf32>
    %10 = vector.broadcast %2 : vector<1x128xf32> to vector<64x128xf32>
    %11 = arith.addf %9, %10 : vector<64x128xf32>
    %cst_17 = arith.constant 0.000000e+00 : f32
    %12 = vector.broadcast %cst_17 : f32 to vector<8x32xf32>
    %cst_18 = arith.constant 0.000000e+00 : f32
    %13 = vector.broadcast %cst_18 : f32 to vector<8x32xf32>
    %14 = vector.extract_strided_slice %11 {offsets = [0, 0], sizes = [8, 128], strides = [1, 1]} : vector<64x128xf32> to vector<8x128xf32>
    %15 = arith.truncf %12 : vector<8x32xf32> to vector<8x32xbf16>
    %cst_19 = arith.constant dense<0.000000e+00> : vector<8x128xf32>
    %16 = tpu.matmul %15, %1, %cst_19 {dimension_numbers = #tpu.dot_dimension_numbers<[1], [0], [0], [1], [0, 0, 1, 1], [], []>} : vector<8x32xbf16>, vector<32x128xbf16>, vector<8x128xf32> -> vector<8x128xf32>
    %17 = arith.addf %14, %16 : vector<8x128xf32>
    %18 = arith.negf %17 : vector<8x128xf32>
    %19 = math.exp %18 : vector<8x128xf32>
    %cst_20 = arith.constant 1.000000e+00 : f32
    %20 = vector.broadcast %cst_20 : f32 to vector<8x128xf32>
    %21 = arith.addf %20, %19 : vector<8x128xf32>
    %22 = arith.divf %20, %21 : vector<8x128xf32>
    %23 = vector.extract_strided_slice %22 {offsets = [0, 0], sizes = [8, 32], strides = [1, 1]} : vector<8x128xf32> to vector<8x32xf32>
    %24 = vector.extract_strided_slice %22 {offsets = [0, 32], sizes = [8, 32], strides = [1, 1]} : vector<8x128xf32> to vector<8x32xf32>
    %25 = vector.extract_strided_slice %22 {offsets = [0, 96], sizes = [8, 32], strides = [1, 1]} : vector<8x128xf32> to vector<8x32xf32>
    %26 = vector.extract_strided_slice %17 {offsets = [0, 64], sizes = [8, 32], strides = [1, 1]} : vector<8x128xf32> to vector<8x32xf32>
    %27 = math.tanh %26 : vector<8x32xf32>
    %28 = arith.mulf %24, %13 : vector<8x32xf32>
    %29 = arith.mulf %23, %27 : vector<8x32xf32>
    %30 = arith.addf %28, %29 : vector<8x32xf32>
    %31 = math.tanh %30 : vector<8x32xf32>
    %32 = arith.mulf %25, %31 : vector<8x32xf32>
    %33 = vector.extract_strided_slice %11 {offsets = [8, 0], sizes = [8, 128], strides = [1, 1]} : vector<64x128xf32> to vector<8x128xf32>
    %34 = arith.truncf %32 : vector<8x32xf32> to vector<8x32xbf16>
    %cst_21 = arith.constant dense<0.000000e+00> : vector<8x128xf32>
    %35 = tpu.matmul %34, %1, %cst_21 {dimension_numbers = #tpu.dot_dimension_numbers<[1], [0], [0], [1], [0, 0, 1, 1], [], []>} : vector<8x32xbf16>, vector<32x128xbf16>, vector<8x128xf32> -> vector<8x128xf32>
    %36 = arith.addf %33, %35 : vector<8x128xf32>
    %37 = arith.negf %36 : vector<8x128xf32>
    %38 = math.exp %37 : vector<8x128xf32>
    %cst_22 = arith.constant 1.000000e+00 : f32
    %39 = vector.broadcast %cst_22 : f32 to vector<8x128xf32>
    %40 = arith.addf %39, %38 : vector<8x128xf32>
    %41 = arith.divf %39, %40 : vector<8x128xf32>
    %42 = vector.extract_strided_slice %41 {offsets = [0, 0], sizes = [8, 32], strides = [1, 1]} : vector<8x128xf32> to vector<8x32xf32>
    %43 = vector.extract_strided_slice %41 {offsets = [0, 32], sizes = [8, 32], strides = [1, 1]} : vector<8x128xf32> to vector<8x32xf32>
    %44 = vector.extract_strided_slice %41 {offsets = [0, 96], sizes = [8, 32], strides = [1, 1]} : vector<8x128xf32> to vector<8x32xf32>
    %45 = vector.extract_strided_slice %36 {offsets = [0, 64], sizes = [8, 32], strides = [1, 1]} : vector<8x128xf32> to vector<8x32xf32>
    %46 = math.tanh %45 : vector<8x32xf32>
    %47 = arith.mulf %43, %30 : vector<8x32xf32>
    %48 = arith.mulf %42, %46 : vector<8x32xf32>
    %49 = arith.addf %47, %48 : vector<8x32xf32>
    %50 = math.tanh %49 : vector<8x32xf32>
    %51 = arith.mulf %44, %50 : vector<8x32xf32>
    %52 = vector.extract_strided_slice %11 {offsets = [16, 0], sizes = [8, 128], strides = [1, 1]} : vector<64x128xf32> to vector<8x128xf32>
    %53 = arith.truncf %51 : vector<8x32xf32> to vector<8x32xbf16>
    %cst_23 = arith.constant dense<0.000000e+00> : vector<8x128xf32>
    %54 = tpu.matmul %53, %1, %cst_23 {dimension_numbers = #tpu.dot_dimension_numbers<[1], [0], [0], [1], [0, 0, 1, 1], [], []>} : vector<8x32xbf16>, vector<32x128xbf16>, vector<8x128xf32> -> vector<8x128xf32>
    %55 = arith.addf %52, %54 : vector<8x128xf32>
    %56 = arith.negf %55 : vector<8x128xf32>
    %57 = math.exp %56 : vector<8x128xf32>
    %cst_24 = arith.constant 1.000000e+00 : f32
    %58 = vector.broadcast %cst_24 : f32 to vector<8x128xf32>
    %59 = arith.addf %58, %57 : vector<8x128xf32>
    %60 = arith.divf %58, %59 : vector<8x128xf32>
    %61 = vector.extract_strided_slice %60 {offsets = [0, 0], sizes = [8, 32], strides = [1, 1]} : vector<8x128xf32> to vector<8x32xf32>
    %62 = vector.extract_strided_slice %60 {offsets = [0, 32], sizes = [8, 32], strides = [1, 1]} : vector<8x128xf32> to vector<8x32xf32>
    %63 = vector.extract_strided_slice %60 {offsets = [0, 96], sizes = [8, 32], strides = [1, 1]} : vector<8x128xf32> to vector<8x32xf32>
    %64 = vector.extract_strided_slice %55 {offsets = [0, 64], sizes = [8, 32], strides = [1, 1]} : vector<8x128xf32> to vector<8x32xf32>
    %65 = math.tanh %64 : vector<8x32xf32>
    %66 = arith.mulf %62, %49 : vector<8x32xf32>
    %67 = arith.mulf %61, %65 : vector<8x32xf32>
    %68 = arith.addf %66, %67 : vector<8x32xf32>
    %69 = math.tanh %68 : vector<8x32xf32>
    %70 = arith.mulf %63, %69 : vector<8x32xf32>
    %71 = vector.extract_strided_slice %11 {offsets = [24, 0], sizes = [8, 128], strides = [1, 1]} : vector<64x128xf32> to vector<8x128xf32>
    %72 = arith.truncf %70 : vector<8x32xf32> to vector<8x32xbf16>
    %cst_25 = arith.constant dense<0.000000e+00> : vector<8x128xf32>
    %73 = tpu.matmul %72, %1, %cst_25 {dimension_numbers = #tpu.dot_dimension_numbers<[1], [0], [0], [1], [0, 0, 1, 1], [], []>} : vector<8x32xbf16>, vector<32x128xbf16>, vector<8x128xf32> -> vector<8x128xf32>
    %74 = arith.addf %71, %73 : vector<8x128xf32>
    %75 = arith.negf %74 : vector<8x128xf32>
    %76 = math.exp %75 : vector<8x128xf32>
    %cst_26 = arith.constant 1.000000e+00 : f32
    %77 = vector.broadcast %cst_26 : f32 to vector<8x128xf32>
    %78 = arith.addf %77, %76 : vector<8x128xf32>
    %79 = arith.divf %77, %78 : vector<8x128xf32>
    %80 = vector.extract_strided_slice %79 {offsets = [0, 0], sizes = [8, 32], strides = [1, 1]} : vector<8x128xf32> to vector<8x32xf32>
    %81 = vector.extract_strided_slice %79 {offsets = [0, 32], sizes = [8, 32], strides = [1, 1]} : vector<8x128xf32> to vector<8x32xf32>
    %82 = vector.extract_strided_slice %79 {offsets = [0, 96], sizes = [8, 32], strides = [1, 1]} : vector<8x128xf32> to vector<8x32xf32>
    %83 = vector.extract_strided_slice %74 {offsets = [0, 64], sizes = [8, 32], strides = [1, 1]} : vector<8x128xf32> to vector<8x32xf32>
    %84 = math.tanh %83 : vector<8x32xf32>
    %85 = arith.mulf %81, %68 : vector<8x32xf32>
    %86 = arith.mulf %80, %84 : vector<8x32xf32>
    %87 = arith.addf %85, %86 : vector<8x32xf32>
    %88 = math.tanh %87 : vector<8x32xf32>
    %89 = arith.mulf %82, %88 : vector<8x32xf32>
    %90 = vector.extract_strided_slice %11 {offsets = [32, 0], sizes = [8, 128], strides = [1, 1]} : vector<64x128xf32> to vector<8x128xf32>
    %91 = arith.truncf %89 : vector<8x32xf32> to vector<8x32xbf16>
    %cst_27 = arith.constant dense<0.000000e+00> : vector<8x128xf32>
    %92 = tpu.matmul %91, %1, %cst_27 {dimension_numbers = #tpu.dot_dimension_numbers<[1], [0], [0], [1], [0, 0, 1, 1], [], []>} : vector<8x32xbf16>, vector<32x128xbf16>, vector<8x128xf32> -> vector<8x128xf32>
    %93 = arith.addf %90, %92 : vector<8x128xf32>
    %94 = arith.negf %93 : vector<8x128xf32>
    %95 = math.exp %94 : vector<8x128xf32>
    %cst_28 = arith.constant 1.000000e+00 : f32
    %96 = vector.broadcast %cst_28 : f32 to vector<8x128xf32>
    %97 = arith.addf %96, %95 : vector<8x128xf32>
    %98 = arith.divf %96, %97 : vector<8x128xf32>
    %99 = vector.extract_strided_slice %98 {offsets = [0, 0], sizes = [8, 32], strides = [1, 1]} : vector<8x128xf32> to vector<8x32xf32>
    %100 = vector.extract_strided_slice %98 {offsets = [0, 32], sizes = [8, 32], strides = [1, 1]} : vector<8x128xf32> to vector<8x32xf32>
    %101 = vector.extract_strided_slice %98 {offsets = [0, 96], sizes = [8, 32], strides = [1, 1]} : vector<8x128xf32> to vector<8x32xf32>
    %102 = vector.extract_strided_slice %93 {offsets = [0, 64], sizes = [8, 32], strides = [1, 1]} : vector<8x128xf32> to vector<8x32xf32>
    %103 = math.tanh %102 : vector<8x32xf32>
    %104 = arith.mulf %100, %87 : vector<8x32xf32>
    %105 = arith.mulf %99, %103 : vector<8x32xf32>
    %106 = arith.addf %104, %105 : vector<8x32xf32>
    %107 = math.tanh %106 : vector<8x32xf32>
    %108 = arith.mulf %101, %107 : vector<8x32xf32>
    %109 = vector.extract_strided_slice %11 {offsets = [40, 0], sizes = [8, 128], strides = [1, 1]} : vector<64x128xf32> to vector<8x128xf32>
    %110 = arith.truncf %108 : vector<8x32xf32> to vector<8x32xbf16>
    %cst_29 = arith.constant dense<0.000000e+00> : vector<8x128xf32>
    %111 = tpu.matmul %110, %1, %cst_29 {dimension_numbers = #tpu.dot_dimension_numbers<[1], [0], [0], [1], [0, 0, 1, 1], [], []>} : vector<8x32xbf16>, vector<32x128xbf16>, vector<8x128xf32> -> vector<8x128xf32>
    %112 = arith.addf %109, %111 : vector<8x128xf32>
    %113 = arith.negf %112 : vector<8x128xf32>
    %114 = math.exp %113 : vector<8x128xf32>
    %cst_30 = arith.constant 1.000000e+00 : f32
    %115 = vector.broadcast %cst_30 : f32 to vector<8x128xf32>
    %116 = arith.addf %115, %114 : vector<8x128xf32>
    %117 = arith.divf %115, %116 : vector<8x128xf32>
    %118 = vector.extract_strided_slice %117 {offsets = [0, 0], sizes = [8, 32], strides = [1, 1]} : vector<8x128xf32> to vector<8x32xf32>
    %119 = vector.extract_strided_slice %117 {offsets = [0, 32], sizes = [8, 32], strides = [1, 1]} : vector<8x128xf32> to vector<8x32xf32>
    %120 = vector.extract_strided_slice %117 {offsets = [0, 96], sizes = [8, 32], strides = [1, 1]} : vector<8x128xf32> to vector<8x32xf32>
    %121 = vector.extract_strided_slice %112 {offsets = [0, 64], sizes = [8, 32], strides = [1, 1]} : vector<8x128xf32> to vector<8x32xf32>
    %122 = math.tanh %121 : vector<8x32xf32>
    %123 = arith.mulf %119, %106 : vector<8x32xf32>
    %124 = arith.mulf %118, %122 : vector<8x32xf32>
    %125 = arith.addf %123, %124 : vector<8x32xf32>
    %126 = math.tanh %125 : vector<8x32xf32>
    %127 = arith.mulf %120, %126 : vector<8x32xf32>
    %128 = vector.extract_strided_slice %11 {offsets = [48, 0], sizes = [8, 128], strides = [1, 1]} : vector<64x128xf32> to vector<8x128xf32>
    %129 = arith.truncf %127 : vector<8x32xf32> to vector<8x32xbf16>
    %cst_31 = arith.constant dense<0.000000e+00> : vector<8x128xf32>
    %130 = tpu.matmul %129, %1, %cst_31 {dimension_numbers = #tpu.dot_dimension_numbers<[1], [0], [0], [1], [0, 0, 1, 1], [], []>} : vector<8x32xbf16>, vector<32x128xbf16>, vector<8x128xf32> -> vector<8x128xf32>
    %131 = arith.addf %128, %130 : vector<8x128xf32>
    %132 = arith.negf %131 : vector<8x128xf32>
    %133 = math.exp %132 : vector<8x128xf32>
    %cst_32 = arith.constant 1.000000e+00 : f32
    %134 = vector.broadcast %cst_32 : f32 to vector<8x128xf32>
    %135 = arith.addf %134, %133 : vector<8x128xf32>
    %136 = arith.divf %134, %135 : vector<8x128xf32>
    %137 = vector.extract_strided_slice %136 {offsets = [0, 0], sizes = [8, 32], strides = [1, 1]} : vector<8x128xf32> to vector<8x32xf32>
    %138 = vector.extract_strided_slice %136 {offsets = [0, 32], sizes = [8, 32], strides = [1, 1]} : vector<8x128xf32> to vector<8x32xf32>
    %139 = vector.extract_strided_slice %136 {offsets = [0, 96], sizes = [8, 32], strides = [1, 1]} : vector<8x128xf32> to vector<8x32xf32>
    %140 = vector.extract_strided_slice %131 {offsets = [0, 64], sizes = [8, 32], strides = [1, 1]} : vector<8x128xf32> to vector<8x32xf32>
    %141 = math.tanh %140 : vector<8x32xf32>
    %142 = arith.mulf %138, %125 : vector<8x32xf32>
    %143 = arith.mulf %137, %141 : vector<8x32xf32>
    %144 = arith.addf %142, %143 : vector<8x32xf32>
    %145 = math.tanh %144 : vector<8x32xf32>
    %146 = arith.mulf %139, %145 : vector<8x32xf32>
    %147 = vector.extract_strided_slice %11 {offsets = [56, 0], sizes = [8, 128], strides = [1, 1]} : vector<64x128xf32> to vector<8x128xf32>
    %148 = arith.truncf %146 : vector<8x32xf32> to vector<8x32xbf16>
    %cst_33 = arith.constant dense<0.000000e+00> : vector<8x128xf32>
    %149 = tpu.matmul %148, %1, %cst_33 {dimension_numbers = #tpu.dot_dimension_numbers<[1], [0], [0], [1], [0, 0, 1, 1], [], []>} : vector<8x32xbf16>, vector<32x128xbf16>, vector<8x128xf32> -> vector<8x128xf32>
    %150 = arith.addf %147, %149 : vector<8x128xf32>
    %151 = arith.negf %150 : vector<8x128xf32>
    %152 = math.exp %151 : vector<8x128xf32>
    %cst_34 = arith.constant 1.000000e+00 : f32
    %153 = vector.broadcast %cst_34 : f32 to vector<8x128xf32>
    %154 = arith.addf %153, %152 : vector<8x128xf32>
    %155 = arith.divf %153, %154 : vector<8x128xf32>
    %156 = vector.extract_strided_slice %155 {offsets = [0, 0], sizes = [8, 32], strides = [1, 1]} : vector<8x128xf32> to vector<8x32xf32>
    %157 = vector.extract_strided_slice %155 {offsets = [0, 32], sizes = [8, 32], strides = [1, 1]} : vector<8x128xf32> to vector<8x32xf32>
    %158 = vector.extract_strided_slice %155 {offsets = [0, 96], sizes = [8, 32], strides = [1, 1]} : vector<8x128xf32> to vector<8x32xf32>
    %159 = vector.extract_strided_slice %150 {offsets = [0, 64], sizes = [8, 32], strides = [1, 1]} : vector<8x128xf32> to vector<8x32xf32>
    %160 = math.tanh %159 : vector<8x32xf32>
    %161 = arith.mulf %157, %144 : vector<8x32xf32>
    %162 = arith.mulf %156, %160 : vector<8x32xf32>
    %163 = arith.addf %161, %162 : vector<8x32xf32>
    %164 = math.tanh %163 : vector<8x32xf32>
    %165 = arith.mulf %158, %164 : vector<8x32xf32>
    %166 = tpu.iota {dimensions = array<i32: 1>} : vector<8x32xi32>
    %c16_i32 = arith.constant 16 : i32
    %167 = vector.broadcast %c16_i32 : i32 to vector<8x32xi32>
    %168 = arith.cmpi slt, %166, %167 : vector<8x32xi32>
    %169 = arith.select %168, %32, %165 : vector<8x32xi1>, vector<8x32xf32>
    %c0_35 = arith.constant 0 : index
    %c0_36 = arith.constant 0 : index
    %c0_37 = arith.constant 0 : index
    %170 = vector.load %arg13[%c0_35, %c0_36, %c0_37] : memref<8x8x32xf32, #tpu.memory_space<vmem>>, vector<1x8x32xf32>
    %171 = vector.shape_cast %170 : vector<1x8x32xf32> to vector<8x32xf32>
    %172 = vector.shape_cast %169 : vector<8x32xf32> to vector<1x8x32xf32>
    tpu.vector_store %arg13[%c0_35, %c0_36, %c0_37], %172 {strides = array<i32>} : memref<8x8x32xf32, #tpu.memory_space<vmem>>, vector<1x8x32xf32>,
    %c16_i32_38 = arith.constant 16 : i32
    %173 = vector.broadcast %c16_i32_38 : i32 to vector<8x32xi32>
    %174 = arith.cmpi slt, %166, %173 : vector<8x32xi32>
    %175 = arith.select %174, %51, %146 : vector<8x32xi1>, vector<8x32xf32>
    %c1 = arith.constant 1 : index
    %c0_39 = arith.constant 0 : index
    %c0_40 = arith.constant 0 : index
    %176 = vector.load %arg13[%c1, %c0_39, %c0_40] : memref<8x8x32xf32, #tpu.memory_space<vmem>>, vector<1x8x32xf32>
    %177 = vector.shape_cast %176 : vector<1x8x32xf32> to vector<8x32xf32>
    %178 = vector.shape_cast %175 : vector<8x32xf32> to vector<1x8x32xf32>
    tpu.vector_store %arg13[%c1, %c0_39, %c0_40], %178 {strides = array<i32>} : memref<8x8x32xf32, #tpu.memory_space<vmem>>, vector<1x8x32xf32>,
    %c16_i32_41 = arith.constant 16 : i32
    %179 = vector.broadcast %c16_i32_41 : i32 to vector<8x32xi32>
    %180 = arith.cmpi slt, %166, %179 : vector<8x32xi32>
    %181 = arith.select %180, %70, %127 : vector<8x32xi1>, vector<8x32xf32>
    %c2 = arith.constant 2 : index
    %c0_42 = arith.constant 0 : index
    %c0_43 = arith.constant 0 : index
    %182 = vector.load %arg13[%c2, %c0_42, %c0_43] : memref<8x8x32xf32, #tpu.memory_space<vmem>>, vector<1x8x32xf32>
    %183 = vector.shape_cast %182 : vector<1x8x32xf32> to vector<8x32xf32>
    %184 = vector.shape_cast %181 : vector<8x32xf32> to vector<1x8x32xf32>
    tpu.vector_store %arg13[%c2, %c0_42, %c0_43], %184 {strides = array<i32>} : memref<8x8x32xf32, #tpu.memory_space<vmem>>, vector<1x8x32xf32>,
    %c16_i32_44 = arith.constant 16 : i32
    %185 = vector.broadcast %c16_i32_44 : i32 to vector<8x32xi32>
    %186 = arith.cmpi slt, %166, %185 : vector<8x32xi32>
    %187 = arith.select %186, %89, %108 : vector<8x32xi1>, vector<8x32xf32>
    %c3 = arith.constant 3 : index
    %c0_45 = arith.constant 0 : index
    %c0_46 = arith.constant 0 : index
    %188 = vector.load %arg13[%c3, %c0_45, %c0_46] : memref<8x8x32xf32, #tpu.memory_space<vmem>>, vector<1x8x32xf32>
    %189 = vector.shape_cast %188 : vector<1x8x32xf32> to vector<8x32xf32>
    %190 = vector.shape_cast %187 : vector<8x32xf32> to vector<1x8x32xf32>
    tpu.vector_store %arg13[%c3, %c0_45, %c0_46], %190 {strides = array<i32>} : memref<8x8x32xf32, #tpu.memory_space<vmem>>, vector<1x8x32xf32>,
    %c16_i32_47 = arith.constant 16 : i32
    %191 = vector.broadcast %c16_i32_47 : i32 to vector<8x32xi32>
    %192 = arith.cmpi slt, %166, %191 : vector<8x32xi32>
    %193 = arith.select %192, %108, %89 : vector<8x32xi1>, vector<8x32xf32>
    %c4 = arith.constant 4 : index
    %c0_48 = arith.constant 0 : index
    %c0_49 = arith.constant 0 : index
    %194 = vector.load %arg13[%c4, %c0_48, %c0_49] : memref<8x8x32xf32, #tpu.memory_space<vmem>>, vector<1x8x32xf32>
    %195 = vector.shape_cast %194 : vector<1x8x32xf32> to vector<8x32xf32>
    %196 = vector.shape_cast %193 : vector<8x32xf32> to vector<1x8x32xf32>
    tpu.vector_store %arg13[%c4, %c0_48, %c0_49], %196 {strides = array<i32>} : memref<8x8x32xf32, #tpu.memory_space<vmem>>, vector<1x8x32xf32>,
    %c16_i32_50 = arith.constant 16 : i32
    %197 = vector.broadcast %c16_i32_50 : i32 to vector<8x32xi32>
    %198 = arith.cmpi slt, %166, %197 : vector<8x32xi32>
    %199 = arith.select %198, %127, %70 : vector<8x32xi1>, vector<8x32xf32>
    %c5 = arith.constant 5 : index
    %c0_51 = arith.constant 0 : index
    %c0_52 = arith.constant 0 : index
    %200 = vector.load %arg13[%c5, %c0_51, %c0_52] : memref<8x8x32xf32, #tpu.memory_space<vmem>>, vector<1x8x32xf32>
    %201 = vector.shape_cast %200 : vector<1x8x32xf32> to vector<8x32xf32>
    %202 = vector.shape_cast %199 : vector<8x32xf32> to vector<1x8x32xf32>
    tpu.vector_store %arg13[%c5, %c0_51, %c0_52], %202 {strides = array<i32>} : memref<8x8x32xf32, #tpu.memory_space<vmem>>, vector<1x8x32xf32>,
    %c16_i32_53 = arith.constant 16 : i32
    %203 = vector.broadcast %c16_i32_53 : i32 to vector<8x32xi32>
    %204 = arith.cmpi slt, %166, %203 : vector<8x32xi32>
    %205 = arith.select %204, %146, %51 : vector<8x32xi1>, vector<8x32xf32>
    %c6 = arith.constant 6 : index
    %c0_54 = arith.constant 0 : index
    %c0_55 = arith.constant 0 : index
    %206 = vector.load %arg13[%c6, %c0_54, %c0_55] : memref<8x8x32xf32, #tpu.memory_space<vmem>>, vector<1x8x32xf32>
    %207 = vector.shape_cast %206 : vector<1x8x32xf32> to vector<8x32xf32>
    %208 = vector.shape_cast %205 : vector<8x32xf32> to vector<1x8x32xf32>
    tpu.vector_store %arg13[%c6, %c0_54, %c0_55], %208 {strides = array<i32>} : memref<8x8x32xf32, #tpu.memory_space<vmem>>, vector<1x8x32xf32>,
    %c16_i32_56 = arith.constant 16 : i32
    %209 = vector.broadcast %c16_i32_56 : i32 to vector<8x32xi32>
    %210 = arith.cmpi slt, %166, %209 : vector<8x32xi32>
    %211 = arith.select %210, %165, %32 : vector<8x32xi1>, vector<8x32xf32>
    %c7 = arith.constant 7 : index
    %c0_57 = arith.constant 0 : index
    %c0_58 = arith.constant 0 : index
    %212 = vector.load %arg13[%c7, %c0_57, %c0_58] : memref<8x8x32xf32, #tpu.memory_space<vmem>>, vector<1x8x32xf32>
    %213 = vector.shape_cast %212 : vector<1x8x32xf32> to vector<8x32xf32>
    %214 = vector.shape_cast %211 : vector<8x32xf32> to vector<1x8x32xf32>
    tpu.vector_store %arg13[%c7, %c0_57, %c0_58], %214 {strides = array<i32>} : memref<8x8x32xf32, #tpu.memory_space<vmem>>, vector<1x8x32xf32>,
    %c0_59 = arith.constant 0 : index
    %c0_60 = arith.constant 0 : index
    %c0_61 = arith.constant 0 : index
    %215 = vector.load %arg13[%c0_59, %c0_60, %c0_61] : memref<8x8x32xf32, #tpu.memory_space<vmem>>, vector<8x8x32xf32>
    %216 = vector.shape_cast %215 : vector<8x8x32xf32> to vector<64x32xf32>
    %217 = arith.truncf %216 : vector<64x32xf32> to vector<64x32xbf16>
    %cst_62 = arith.constant dense<0.000000e+00> : vector<64x32xf32>
    %218 = tpu.matmul %217, %3, %cst_62 {dimension_numbers = #tpu.dot_dimension_numbers<[1], [0], [0], [1], [0, 0, 1, 1], [], []>} : vector<64x32xbf16>, vector<32x32xbf16>, vector<64x32xf32> -> vector<64x32xf32>
    %219 = vector.broadcast %4 : vector<1x32xf32> to vector<64x32xf32>
    %220 = arith.addf %218, %219 : vector<64x32xf32>
    %221 = math.tanh %220 : vector<64x32xf32>
    %222 = vector.broadcast %5 : vector<1x32xf32> to vector<64x32xf32>
    %223 = arith.mulf %221, %222 : vector<64x32xf32>
    %224 = vector.shape_cast %223 : vector<64x32xf32> to vector<8x8x32xf32>
    %cst_63 = arith.constant dense<0.000000e+00> : vector<8x8xf32>
    %225 = vector.multi_reduction <add>, %224, %cst_63 [2] : vector<8x8x32xf32> to vector<8x8xf32>
    %c0_64 = arith.constant 0 : index
    %c0_65 = arith.constant 0 : index
    %226 = vector.load %arg2[%c0_64, %c0_65] : memref<8x8xf32, #tpu.memory_space<vmem>>, vector<8x8xf32>
    %cst_66 = arith.constant 0.000000e+00 : f32
    %227 = vector.broadcast %cst_66 : f32 to vector<8x8xf32>
    %228 = arith.cmpf ogt, %226, %227 : vector<8x8xf32>
    %cst_67 = arith.constant -1.000000e+09 : f32
    %229 = vector.broadcast %cst_67 : f32 to vector<8x8xf32>
    %230 = arith.select %228, %225, %229 : vector<8x8xi1>, vector<8x8xf32>
    %cst_68 = arith.constant dense<0xFF800000> : vector<8xf32>
    %231 = vector.multi_reduction <maximumf>, %230, %cst_68 [0] : vector<8x8xf32> to vector<8xf32>
    %232 = vector.shape_cast %231 : vector<8xf32> to vector<1x8xf32>
    %233 = vector.broadcast %232 : vector<1x8xf32> to vector<8x8xf32>
    %234 = arith.subf %230, %233 : vector<8x8xf32>
    %235 = math.exp %234 : vector<8x8xf32>
    %cst_69 = arith.constant dense<0.000000e+00> : vector<8xf32>
    %236 = vector.multi_reduction <add>, %235, %cst_69 [0] : vector<8x8xf32> to vector<8xf32>
    %237 = vector.shape_cast %236 : vector<8xf32> to vector<1x8xf32>
    %238 = vector.broadcast %237 : vector<1x8xf32> to vector<8x8xf32>
    %239 = arith.divf %235, %238 : vector<8x8xf32>
    %240 = vector.shape_cast %239 : vector<8x8xf32> to vector<8x8x1xf32>
    %241 = vector.broadcast %240 : vector<8x8x1xf32> to vector<8x8x32xf32>
    %242 = arith.mulf %241, %215 : vector<8x8x32xf32>
    %cst_70 = arith.constant dense<0.000000e+00> : vector<8x32xf32>
    %243 = vector.multi_reduction <add>, %242, %cst_70 [0] : vector<8x8x32xf32> to vector<8x32xf32>
    %244 = arith.truncf %243 : vector<8x32xf32> to vector<8x32xbf16>
    %cst_71 = arith.constant dense<0.000000e+00> : vector<8x20xf32>
    %245 = tpu.matmul %244, %6, %cst_71 {dimension_numbers = #tpu.dot_dimension_numbers<[1], [0], [0], [1], [0, 0, 1, 1], [], []>} : vector<8x32xbf16>, vector<32x20xbf16>, vector<8x20xf32> -> vector<8x20xf32>
    %246 = vector.broadcast %7 : vector<1x20xf32> to vector<8x20xf32>
    %247 = arith.addf %245, %246 : vector<8x20xf32>
    %c0_72 = arith.constant 0 : index
    %c0_73 = arith.constant 0 : index
    %248 = vector.load %arg12[%c0_72, %c0_73] : memref<8x20xf32, #tpu.memory_space<vmem>>, vector<8x20xf32>
    tpu.vector_store %arg12[%c0_72, %c0_73], %247 {strides = array<i32>} : memref<8x20xf32, #tpu.memory_space<vmem>>, vector<8x20xf32>,
    %cst_74 = arith.constant 0.000000e+00 : f32
    %249 = vector.broadcast %cst_74 : f32 to vector<8x5xf32>
    %250 = vector.extract_strided_slice %247 {offsets = [0, 0], sizes = [8, 5], strides = [1, 1]} : vector<8x20xf32> to vector<8x5xf32>
    %cst_75 = arith.constant dense<0xFF800000> : vector<8xf32>
    %251 = vector.multi_reduction <maximumf>, %250, %cst_75 [1] : vector<8x5xf32> to vector<8xf32>
    %252 = vector.shape_cast %251 : vector<8xf32> to vector<8x1xf32>
    %253 = vector.broadcast %252 : vector<8x1xf32> to vector<8x5xf32>
    %254 = arith.subf %250, %253 : vector<8x5xf32>
    %255 = math.exp %254 : vector<8x5xf32>
    %cst_76 = arith.constant dense<0.000000e+00> : vector<8xf32>
    %256 = vector.multi_reduction <add>, %255, %cst_76 [1] : vector<8x5xf32> to vector<8xf32>
    %257 = vector.shape_cast %256 : vector<8xf32> to vector<8x1xf32>
    %258 = tpu.reciprocal %257 {approx = true} : vector<8x1xf32> -> vector<8x1xf32>
    %259 = vector.broadcast %258 : vector<8x1xf32> to vector<8x5xf32>
    %260 = arith.mulf %255, %259 : vector<8x5xf32>
    %261 = arith.addf %249, %260 : vector<8x5xf32>
    %262 = vector.extract_strided_slice %247 {offsets = [0, 5], sizes = [8, 5], strides = [1, 1]} : vector<8x20xf32> to vector<8x5xf32>
    %cst_77 = arith.constant dense<0xFF800000> : vector<8xf32>
    %263 = vector.multi_reduction <maximumf>, %262, %cst_77 [1] : vector<8x5xf32> to vector<8xf32>
    %264 = vector.shape_cast %263 : vector<8xf32> to vector<8x1xf32>
    %265 = vector.broadcast %264 : vector<8x1xf32> to vector<8x5xf32>
    %266 = arith.subf %262, %265 : vector<8x5xf32>
    %267 = math.exp %266 : vector<8x5xf32>
    %cst_78 = arith.constant dense<0.000000e+00> : vector<8xf32>
    %268 = vector.multi_reduction <add>, %267, %cst_78 [1] : vector<8x5xf32> to vector<8xf32>
    %269 = vector.shape_cast %268 : vector<8xf32> to vector<8x1xf32>
    %270 = tpu.reciprocal %269 {approx = true} : vector<8x1xf32> -> vector<8x1xf32>
    %271 = vector.broadcast %270 : vector<8x1xf32> to vector<8x5xf32>
    %272 = arith.mulf %267, %271 : vector<8x5xf32>
    %273 = arith.addf %261, %272 : vector<8x5xf32>
    %274 = vector.extract_strided_slice %247 {offsets = [0, 10], sizes = [8, 5], strides = [1, 1]} : vector<8x20xf32> to vector<8x5xf32>
    %cst_79 = arith.constant dense<0xFF800000> : vector<8xf32>
    %275 = vector.multi_reduction <maximumf>, %274, %cst_79 [1] : vector<8x5xf32> to vector<8xf32>
    %276 = vector.shape_cast %275 : vector<8xf32> to vector<8x1xf32>
    %277 = vector.broadcast %276 : vector<8x1xf32> to vector<8x5xf32>
    %278 = arith.subf %274, %277 : vector<8x5xf32>
    %279 = math.exp %278 : vector<8x5xf32>
    %cst_80 = arith.constant dense<0.000000e+00> : vector<8xf32>
    %280 = vector.multi_reduction <add>, %279, %cst_80 [1] : vector<8x5xf32> to vector<8xf32>
    %281 = vector.shape_cast %280 : vector<8xf32> to vector<8x1xf32>
    %282 = tpu.reciprocal %281 {approx = true} : vector<8x1xf32> -> vector<8x1xf32>
    %283 = vector.broadcast %282 : vector<8x1xf32> to vector<8x5xf32>
    %284 = arith.mulf %279, %283 : vector<8x5xf32>
    %285 = arith.addf %273, %284 : vector<8x5xf32>
    %286 = vector.extract_strided_slice %247 {offsets = [0, 15], sizes = [8, 5], strides = [1, 1]} : vector<8x20xf32> to vector<8x5xf32>
    %cst_81 = arith.constant dense<0xFF800000> : vector<8xf32>
    %287 = vector.multi_reduction <maximumf>, %286, %cst_81 [1] : vector<8x5xf32> to vector<8xf32>
    %288 = vector.shape_cast %287 : vector<8xf32> to vector<8x1xf32>
    %289 = vector.broadcast %288 : vector<8x1xf32> to vector<8x5xf32>
    %290 = arith.subf %286, %289 : vector<8x5xf32>
    %291 = math.exp %290 : vector<8x5xf32>
    %cst_82 = arith.constant dense<0.000000e+00> : vector<8xf32>
    %292 = vector.multi_reduction <add>, %291, %cst_82 [1] : vector<8x5xf32> to vector<8xf32>
    %293 = vector.shape_cast %292 : vector<8xf32> to vector<8x1xf32>
    %294 = tpu.reciprocal %293 {approx = true} : vector<8x1xf32> -> vector<8x1xf32>
    %295 = vector.broadcast %294 : vector<8x1xf32> to vector<8x5xf32>
    %296 = arith.mulf %291, %295 : vector<8x5xf32>
    %297 = arith.addf %285, %296 : vector<8x5xf32>
    %cst_83 = arith.constant 2.500000e-01 : f32
    %298 = vector.broadcast %cst_83 : f32 to vector<8x5xf32>
    %299 = arith.mulf %297, %298 : vector<8x5xf32>
    %c0_84 = arith.constant 0 : index
    %c0_85 = arith.constant 0 : index
    %300 = vector.load %arg11[%c0_84, %c0_85] : memref<8x5xf32, #tpu.memory_space<vmem>>, vector<8x5xf32>
    tpu.vector_store %arg11[%c0_84, %c0_85], %299 {strides = array<i32>} : memref<8x5xf32, #tpu.memory_space<vmem>>, vector<8x5xf32>,
    return
  }
  func.func @transform_0(%arg0: i32) -> (i32, i32) {
    %c0_i32 = arith.constant 0 : i32
    %c0_i32_0 = arith.constant 0 : i32
    %c0_i32_1 = arith.constant 0 : i32
    return %c0_i32, %c0_i32_0 : i32, i32
  }
  func.func @transform_1(%arg0: i32) -> (i32, i32) {
    %c0_i32 = arith.constant 0 : i32
    %c0_i32_0 = arith.constant 0 : i32
    %c0_i32_1 = arith.constant 0 : i32
    return %c0_i32, %c0_i32_0 : i32, i32
  }
  func.func @transform_2(%arg0: i32) -> (i32, i32) {
    %c0_i32 = arith.constant 0 : i32
    %c0_i32_0 = arith.constant 0 : i32
    %c0_i32_1 = arith.constant 0 : i32
    return %c0_i32, %c0_i32_0 : i32, i32
  }
  func.func @transform_3(%arg0: i32) -> (i32, i32) {
    %c0_i32 = arith.constant 0 : i32
    %c0_i32_0 = arith.constant 0 : i32
    %c0_i32_1 = arith.constant 0 : i32
    return %c0_i32, %c0_i32_0 : i32, i32
  }
  func.func @transform_4(%arg0: i32) -> (i32, i32) {
    %c0_i32 = arith.constant 0 : i32
    %c0_i32_0 = arith.constant 0 : i32
    %c0_i32_1 = arith.constant 0 : i32
    return %c0_i32, %c0_i32_0 : i32, i32
  }
  func.func @transform_5(%arg0: i32) -> (i32, i32) {
    %c0_i32 = arith.constant 0 : i32
    %c0_i32_0 = arith.constant 0 : i32
    %c0_i32_1 = arith.constant 0 : i32
    return %c0_i32, %c0_i32_0 : i32, i32
  }
  func.func @transform_6(%arg0: i32) -> (i32, i32) {
    %c0_i32 = arith.constant 0 : i32
    %c0_i32_0 = arith.constant 0 : i32
    %c0_i32_1 = arith.constant 0 : i32
    return %c0_i32, %c0_i32_0 : i32, i32
  }
  func.func @transform_7(%arg0: i32) -> (i32, i32) {
    %c0_i32 = arith.constant 0 : i32
    %c0_i32_0 = arith.constant 0 : i32
    %c0_i32_1 = arith.constant 0 : i32
    return %c0_i32, %c0_i32_0 : i32, i32
  }
  func.func @transform_8(%arg0: i32) -> (i32, i32) {
    %c0_i32 = arith.constant 0 : i32
    %c0_i32_0 = arith.constant 0 : i32
    %c0_i32_1 = arith.constant 0 : i32
    return %c0_i32, %c0_i32_0 : i32, i32
  }
  func.func @transform_9(%arg0: i32) -> (i32, i32) {
    %c0_i32 = arith.constant 0 : i32
    %c0_i32_0 = arith.constant 0 : i32
    %c0_i32_1 = arith.constant 0 : i32
    return %c0_i32, %c0_i32_0 : i32, i32
  }
  func.func @transform_10(%arg0: i32) -> (i32, i32) {
    %c0_i32 = arith.constant 0 : i32
    %c0_i32_0 = arith.constant 0 : i32
    %c0_i32_1 = arith.constant 0 : i32
    return %c0_i32, %c0_i32_0 : i32, i32
  }
  func.func @transform_11(%arg0: i32) -> (i32, i32) {
    %c0_i32 = arith.constant 0 : i32
    %c0_i32_0 = arith.constant 0 : i32
    %c0_i32_1 = arith.constant 0 : i32
    return %c0_i32, %c0_i32_0 : i32, i32
  }
}

</mosaic_0001>

<llo_original>
// kernel: stochastic_classifier_forward.1
$region0: #{stochastic_classifier_forward.1}
  #allocation0 [shape = 'u32[]', space=smem, size = 0x4, offset = 0x4, fixed_abs, tag = 'smem constant byte address 0x4 - core index']
  #allocation1 [shape = 'u32[144,128]{1,0:T(1,128)}', space=vmem, size = 0x12000, scoped, tag = 'internal scratch']
  #allocation2 [shape = 'f32[8,8,32]{2,1,0:T(8,128)}', space=vmem, size = 0x8000, scoped, tag = 'scratch operand']
  %s0 = inlined_call_operand.vmem [shape: bf16[64,64], index: 0, kind: input, shape index: {}]
  %s1 = inlined_call_operand.vmem [shape: f32[8,8], index: 1, kind: input, shape index: {}]
  %s2 = inlined_call_operand.vmem [shape: bf16[64,128], index: 2, kind: input, shape index: {}]
  %s3 = inlined_call_operand.vmem [shape: bf16[32,128], index: 3, kind: input, shape index: {}]
  %s4 = inlined_call_operand.vmem [shape: f32[1,128], index: 4, kind: input, shape index: {}]
  %s5 = inlined_call_operand.vmem [shape: bf16[32,32], index: 5, kind: input, shape index: {}]
  %s6 = inlined_call_operand.vmem [shape: f32[1,32], index: 6, kind: input, shape index: {}]
  %s7 = inlined_call_operand.vmem [shape: f32[1,32], index: 7, kind: input, shape index: {}]
  %s8 = inlined_call_operand.vmem [shape: bf16[32,20], index: 8, kind: input, shape index: {}]
  %s9 = inlined_call_operand.vmem [shape: f32[1,20], index: 9, kind: input, shape index: {}]
  %s10 = inlined_call_operand.vmem [shape: f32[8,5], index: 10, kind: output, shape index: {0}]
  %s11 = inlined_call_operand.vmem [shape: f32[8,20], index: 11, kind: output, shape index: {1}]
  %12 = xla_tuple %s10, %s11
  %s13 = sld [smem:[#allocation0]]
  $region58: #{stochastic_classifier_forward.1} parent=0
    _
  %s15 = ssub.s32 1, %s13
  %s16 = scalar_select 0, %s15, %s13
  // Predicated region
  $region2: #{stochastic_classifier_forward.1} parent=0 // pred_check
    _
  $region3: #{stochastic_classifier_forward.1} parent=0 // pred_check_branch
    %18 = sbr.rel (0) target = $region5
  $region4: #{stochastic_classifier_forward.1} parent=0 // pred_region
    _
  $region5: #{stochastic_classifier_forward.1} parent=0 // pred_fallthru
    _
  // Predicated region
  $region6: #{stochastic_classifier_forward.1} parent=0 // pred_check
    _
  $region7: #{stochastic_classifier_forward.1} parent=0 // pred_check_branch
    %20 = sbr.rel (0) target = $region9
  $region8: #{stochastic_classifier_forward.1} parent=0 // pred_region
    _
  $region9: #{stochastic_classifier_forward.1} parent=0 // pred_fallthru
    _
  // Predicated region
  $region10: #{stochastic_classifier_forward.1} parent=0 // pred_check
    _
  $region11: #{stochastic_classifier_forward.1} parent=0 // pred_check_branch
    %22 = sbr.rel (0) target = $region13
  $region12: #{stochastic_classifier_forward.1} parent=0 // pred_region
    _
  $region13: #{stochastic_classifier_forward.1} parent=0 // pred_fallthru
    _
  // Predicated region
  $region14: #{stochastic_classifier_forward.1} parent=0 // pred_check
    _
  $region15: #{stochastic_classifier_forward.1} parent=0 // pred_check_branch
    %24 = sbr.rel (0) target = $region17
  $region16: #{stochastic_classifier_forward.1} parent=0 // pred_region
    _
  $region17: #{stochastic_classifier_forward.1} parent=0 // pred_fallthru
    _
  // Predicated region
  $region18: #{stochastic_classifier_forward.1} parent=0 // pred_check
    _
  $region19: #{stochastic_classifier_forward.1} parent=0 // pred_check_branch
    %26 = sbr.rel (0) target = $region21
  $region20: #{stochastic_classifier_forward.1} parent=0 // pred_region
    _
  $region21: #{stochastic_classifier_forward.1} parent=0 // pred_fallthru
    _
  // Predicated region
  $region22: #{stochastic_classifier_forward.1} parent=0 // pred_check
    _
  $region23: #{stochastic_classifier_forward.1} parent=0 // pred_check_branch
    %28 = sbr.rel (0) target = $region25
  $region24: #{stochastic_classifier_forward.1} parent=0 // pred_region
    _
  $region25: #{stochastic_classifier_forward.1} parent=0 // pred_fallthru
    _
  // Predicated region
  $region26: #{stochastic_classifier_forward.1} parent=0 // pred_check
    _
  $region27: #{stochastic_classifier_forward.1} parent=0 // pred_check_branch
    %30 = sbr.rel (0) target = $region29
  $region28: #{stochastic_classifier_forward.1} parent=0 // pred_region
    _
  $region29: #{stochastic_classifier_forward.1} parent=0 // pred_fallthru
    _
  // Predicated region
  $region30: #{stochastic_classifier_forward.1} parent=0 // pred_check
    _
  $region31: #{stochastic_classifier_forward.1} parent=0 // pred_check_branch
    %32 = sbr.rel (0) target = $region33
  $region32: #{stochastic_classifier_forward.1} parent=0 // pred_region
    _
  $region33: #{stochastic_classifier_forward.1} parent=0 // pred_fallthru
    _
  // Predicated region
  $region34: #{stochastic_classifier_forward.1} parent=0 // pred_check
    _
  $region35: #{stochastic_classifier_forward.1} parent=0 // pred_check_branch
    %34 = sbr.rel (0) target = $region37
  $region36: #{stochastic_classifier_forward.1} parent=0 // pred_region
    _
  $region37: #{stochastic_classifier_forward.1} parent=0 // pred_fallthru
    _
  // Predicated region
  $region38: #{stochastic_classifier_forward.1} parent=0 // pred_check
    _
  $region39: #{stochastic_classifier_forward.1} parent=0 // pred_check_branch
    %36 = sbr.rel (0) target = $region41
  $region40: #{stochastic_classifier_forward.1} parent=0 // pred_region
    _
  $region41: #{stochastic_classifier_forward.1} parent=0 // pred_fallthru
    _
  %v38 = vld [vmem:[%s2] sm:$0xf]
  %v39 = vld [vmem:[%s2 + $0x4] sm:$0xf]
  %v40 = vld [vmem:[%s2 + $0x8] sm:$0xf]
  %v41 = vld [vmem:[%s2 + $0xc] sm:$0xf]
  %v42 = vld [vmem:[%s2 + $0x10] sm:$0xf]
  %v43 = vld [vmem:[%s2 + $0x14] sm:$0xf]
  %v44 = vld [vmem:[%s2 + $0x18] sm:$0xf]
  %v45 = vld [vmem:[%s2 + $0x1c] sm:$0xf]
  %v46 = vld [vmem:[%s3] sm:$0xf]
  %v47 = vld [vmem:[%s3 + $0x4] sm:$0xf]
  %v48 = vld [vmem:[%s3 + $0x8] sm:$0xf]
  %v49 = vld [vmem:[%s3 + $0xc] sm:$0xf]
  %v50 = vld [vmem:[%s4] sm:$0x1]
  %v51 = vld [vmem:[%s5] sm:$0xf]
  %v52 = vld [vmem:[%s5 + $0x4] sm:$0xf]
  %v53 = vld [vmem:[%s5 + $0x8] sm:$0xf]
  %v54 = vld [vmem:[%s5 + $0xc] sm:$0xf]
  %v55 = vld [vmem:[%s6] sm:$0x1]
  %v56 = vld [vmem:[%s7] sm:$0x1]
  %v57 = vld [vmem:[%s8] sm:$0xf]
  %v58 = vld [vmem:[%s8 + $0x4] sm:$0xf]
  %v59 = vld [vmem:[%s8 + $0x8] sm:$0xf]
  %v60 = vld [vmem:[%s8 + $0xc] sm:$0xf]
  %v61 = vld [vmem:[%s9] sm:$0x1]
  %v62 = vld [vmem:[%s0] sm:$0xf]
  %v63 = vld [vmem:[%s0 + $0x4] sm:$0xf]
  %v64 = vld [vmem:[%s0 + $0x8] sm:$0xf]
  %v65 = vld [vmem:[%s0 + $0xc] sm:$0xf]
  %v66 = vld [vmem:[%s0 + $0x10] sm:$0xf]
  %v67 = vld [vmem:[%s0 + $0x14] sm:$0xf]
  %v68 = vld [vmem:[%s0 + $0x18] sm:$0xf]
  %v69 = vld [vmem:[%s0 + $0x1c] sm:$0xf]
  %v71 = vlaneseq
  %v72 = vshrl.u32 %v71, 7
  %v73 = vsub.s32 0, %v72
  %v74 = vrot.slane %v50, %v73
  %v84 = vunpack.c.l.b16 %v62
  %v85 = vunpack.c.l.b16 %v63
  %v86 = vunpack.c.l.b16 %v64
  %v87 = vunpack.c.l.b16 %v65
  %v88 = vunpack.c.l.b16 %v66
  %v89 = vunpack.c.l.b16 %v67
  %v90 = vunpack.c.l.b16 %v68
  %v91 = vunpack.c.l.b16 %v69
  %v92 = vpack.c.b16 %v85, %v84
  %v93 = vpack.c.b16 %v87, %v86
  %v94 = vpack.c.b16 %v89, %v88
  %v95 = vpack.c.b16 %v91, %v90
  %v104 = vunpack.c.l.b16 %v38
  %v105 = vunpack.c.l.b16 %v39
  %v106 = vunpack.c.l.b16 %v40
  %v107 = vunpack.c.l.b16 %v41
  %v108 = vunpack.c.l.b16 %v42
  %v109 = vunpack.c.l.b16 %v43
  %v110 = vunpack.c.l.b16 %v44
  %v111 = vunpack.c.l.b16 %v45
  %v112 = vpack.c.b16 %v105, %v104
  %v113 = vpack.c.b16 %v107, %v106
  %v114 = vpack.c.b16 %v109, %v108
  %v115 = vpack.c.b16 %v111, %v110
  %vm120 = vcmask 523264
  %v122 = vsel %vm120, %v92, 0
  %v125 = vsel %vm120, %v93, 0
  %v128 = vsel %vm120, %v94, 0
  %v131 = vsel %vm120, %v95, 0
  %133 = vmatprep.subr.bf16.mxu0 0
  %134 = vmatpush1.bf16.msra.mxu0 0
  %135 = vmatprep.subr.bf16.mxu0 0
  %136 = vmatpush1.bf16.msra.mxu0 0
  %137 = vmatprep.subr.bf16.mxu0 0
  %138 = vmatpush1.bf16.msra.mxu0 0
  %139 = vmatprep.subr.bf16.mxu0 0
  %140 = vmatpush1.bf16.msra.mxu0 0
  %141 = vmatprep.subr.bf16.mxu0 0
  %142 = vmatpush1.bf16.msra.mxu0 %v115
  %143 = vmatprep.subr.bf16.mxu0 0
  %144 = vmatpush1.bf16.msra.mxu0 %v114
  %145 = vmatprep.subr.bf16.mxu0 0
  %146 = vmatpush1.bf16.msra.mxu0 %v113
  %147 = vmatprep.subr.bf16.mxu0 0
  %148 = vmatpush1.bf16.msra.mxu0 %v112
  %149 = vmatprep.subr.bf16.mxu0 0
  %150 = vmatpush2.bf16.msra.mxu0 0
  %151 = vmatprep.subr.bf16.mxu0 0
  %152 = vmatpush2.bf16.msra.mxu0 0
  %153 = vmatprep.subr.bf16.mxu0 0
  %154 = vmatpush2.bf16.msra.mxu0 0
  %155 = vmatprep.subr.bf16.mxu0 0
  %156 = vmatpush2.bf16.msra.mxu0 0
  %157 = vmatprep.subr.bf16.mxu0 0
  %158 = vmatpush2.bf16.msra.mxu0 0
  %159 = vmatprep.subr.bf16.mxu0 0
  %160 = vmatpush2.bf16.msra.mxu0 0
  %161 = vmatprep.subr.bf16.mxu0 0
  %162 = vmatpush2.bf16.msra.mxu0 0
  %163 = vmatprep.subr.bf16.mxu0 0
  %164 = vmatpush2.bf16.msra.mxu0 0
  %165 = vmatprep.mubr.bf16.mxu0 0
  %166 = vmatmul.mubr.bf16.gmra.mxu0 %v122
  %v167 = vpop.f32.mrf.mxu0
  %v168 = vadd.f32 %v74, %v167
  %v169 = vpop.f32.mrf.mxu0
  %v170 = vpop.f32.mrf.mxu0
  %v171 = vadd.f32 %v74, %v170
  %v172 = vpop.f32.mrf.mxu0
  %173 = vmatprep.mubr.bf16.mxu0 0
  %174 = vmatmul.mubr.bf16.gmra.mxu0 %v125
  %v175 = vpop.f32.mrf.mxu0
  %v176 = vadd.f32 %v74, %v175
  %v177 = vpop.f32.mrf.mxu0
  %v178 = vpop.f32.mrf.mxu0
  %v179 = vadd.f32 %v74, %v178
  %v180 = vpop.f32.mrf.mxu0
  %181 = vmatprep.mubr.bf16.mxu0 0
  %182 = vmatmul.mubr.bf16.gmra.mxu0 %v128
  %v183 = vpop.f32.mrf.mxu0
  %v184 = vadd.f32 %v74, %v183
  %v185 = vpop.f32.mrf.mxu0
  %v186 = vpop.f32.mrf.mxu0
  %v187 = vadd.f32 %v74, %v186
  %v188 = vpop.f32.mrf.mxu0
  %189 = vmatprep.mubr.bf16.mxu0 0
  %190 = vmatmul.mubr.bf16.gmra.mxu0 %v131
  %v191 = vpop.f32.mrf.mxu0
  %v192 = vadd.f32 %v74, %v191
  %v193 = vpop.f32.mrf.mxu0
  %v194 = vpop.f32.mrf.mxu0
  %v195 = vadd.f32 %v74, %v194
  %v196 = vpop.f32.mrf.mxu0
  %197 = vdwg.mxu0
  %v202 = vunpack.c.l.b16 %v46
  %v203 = vunpack.c.l.b16 %v47
  %v204 = vunpack.c.l.b16 %v48
  %v205 = vunpack.c.l.b16 %v49
  %v206 = vpack.c.b16 %v203, %v202
  %v207 = vpack.c.b16 %v205, %v204
  %vm210 = vcmask 261120
  %v212 = vsel %vm210, 0, 0
  %214 = vmatprep.subr.bf16.mxu0 0
  %215 = vmatpush1.bf16.msra.mxu0 0
  %216 = vmatprep.subr.bf16.mxu0 0
  %217 = vmatpush1.bf16.msra.mxu0 0
  %218 = vmatprep.subr.bf16.mxu0 0
  %219 = vmatpush1.bf16.msra.mxu0 0
  %220 = vmatprep.subr.bf16.mxu0 0
  %221 = vmatpush1.bf16.msra.mxu0 0
  %222 = vmatprep.subr.bf16.mxu0 0
  %223 = vmatpush1.bf16.msra.mxu0 0
  %224 = vmatprep.subr.bf16.mxu0 0
  %225 = vmatpush1.bf16.msra.mxu0 0
  %226 = vmatprep.subr.bf16.mxu0 0
  %227 = vmatpush1.bf16.msra.mxu0 %v207
  %228 = vmatprep.subr.bf16.mxu0 0
  %229 = vmatpush1.bf16.msra.mxu0 %v206
  %230 = vmatprep.subr.bf16.mxu0 0
  %231 = vmatpush2.bf16.msra.mxu0 0
  %232 = vmatprep.subr.bf16.mxu0 0
  %233 = vmatpush2.bf16.msra.mxu0 0
  %234 = vmatprep.subr.bf16.mxu0 0
  %235 = vmatpush2.bf16.msra.mxu0 0
  %236 = vmatprep.subr.bf16.mxu0 0
  %237 = vmatpush2.bf16.msra.mxu0 0
  %238 = vmatprep.subr.bf16.mxu0 0
  %239 = vmatpush2.bf16.msra.mxu0 0
  %240 = vmatprep.subr.bf16.mxu0 0
  %241 = vmatpush2.bf16.msra.mxu0 0
  %242 = vmatprep.subr.bf16.mxu0 0
  %243 = vmatpush2.bf16.msra.mxu0 0
  %244 = vmatprep.subr.bf16.mxu0 0
  %245 = vmatpush2.bf16.msra.mxu0 0
  %246 = vmatprep.mubr.bf16.mxu0 0
  %247 = vmatmul.mubr.bf16.gmra.mxu0 %v212
  %v248 = vpop.f32.mrf.mxu0
  %v249 = vadd.f32 0.0, %v248
  %v250 = vpop.f32.mrf.mxu0
  %v251 = vpop.f32.mrf.mxu0
  %v252 = vpop.f32.mrf.mxu0
  %253 = vdwg.mxu0
  %v254 = vadd.f32 %v168, %v249
  %v255 = vxor.u32 %v254, 2147483648
  %v256 = vmul.f32 %v255, 1.442695
  %v257 = vpow.pop %v256
  %v258 = vadd.f32 %v257, 1.0
  %v259 = vrcp.pop %v258
  %v260 = vmul.f32 1.0, %v259
  %v261 = vtanh.pop %v254
  %v262 = vmul.f32 %v260, 0.0
  %264 = vrot.lane.b32.xlu0 %v261, 64
  %v265 = vpop.permute.xlu0 %264
  %v267 = vmul.f32 %v260, %v265
  %269 = vrot.lane.b32.xlu0 %v267, 32
  %v270 = vpop.permute.xlu0 %269
  %v272 = vadd.f32 %v262, %v270
  %v273 = vtanh.pop %v272
  %275 = vrot.lane.b32.xlu0 %v273, 64
  %v276 = vpop.permute.xlu0 %275
  %v278 = vmul.f32 %v260, %v276
  %v279 = vpack.c.bf16 %v278, %v278
  %281 = vrot.lane.b32.xlu0 %v279, 32
  %v282 = vpop.permute.xlu0 %281
  %v284 = vsel %vm210, %v282, 0
  %286 = vmatprep.subr.bf16.mxu0 0
  %287 = vmatpush1.bf16.msra.mxu0 0
  %288 = vmatprep.subr.bf16.mxu0 0
  %289 = vmatpush1.bf16.msra.mxu0 0
  %290 = vmatprep.subr.bf16.mxu0 0
  %291 = vmatpush1.bf16.msra.mxu0 0
  %292 = vmatprep.subr.bf16.mxu0 0
  %293 = vmatpush1.bf16.msra.mxu0 0
  %294 = vmatprep.subr.bf16.mxu0 0
  %295 = vmatpush1.bf16.msra.mxu0 0
  %296 = vmatprep.subr.bf16.mxu0 0
  %297 = vmatpush1.bf16.msra.mxu0 0
  %298 = vmatprep.subr.bf16.mxu0 0
  %299 = vmatpush1.bf16.msra.mxu0 %v207
  %300 = vmatprep.subr.bf16.mxu0 0
  %301 = vmatpush1.bf16.msra.mxu0 %v206
  %302 = vmatprep.subr.bf16.mxu0 0
  %303 = vmatpush2.bf16.msra.mxu0 0
  %304 = vmatprep.subr.bf16.mxu0 0
  %305 = vmatpush2.bf16.msra.mxu0 0
  %306 = vmatprep.subr.bf16.mxu0 0
  %307 = vmatpush2.bf16.msra.mxu0 0
  %308 = vmatprep.subr.bf16.mxu0 0
  %309 = vmatpush2.bf16.msra.mxu0 0
  %310 = vmatprep.subr.bf16.mxu0 0
  %311 = vmatpush2.bf16.msra.mxu0 0
  %312 = vmatprep.subr.bf16.mxu0 0
  %313 = vmatpush2.bf16.msra.mxu0 0
  %314 = vmatprep.subr.bf16.mxu0 0
  %315 = vmatpush2.bf16.msra.mxu0 0
  %316 = vmatprep.subr.bf16.mxu0 0
  %317 = vmatpush2.bf16.msra.mxu0 0
  %318 = vmatprep.mubr.bf16.mxu0 0
  %319 = vmatmul.mubr.bf16.gmra.mxu0 %v284
  %v320 = vpop.f32.mrf.mxu0
  %v321 = vadd.f32 0.0, %v320
  %v322 = vpop.f32.mrf.mxu0
  %v323 = vpop.f32.mrf.mxu0
  %v324 = vpop.f32.mrf.mxu0
  %325 = vdwg.mxu0
  %v326 = vadd.f32 %v171, %v321
  %v327 = vxor.u32 %v326, 2147483648
  %v328 = vmul.f32 %v327, 1.442695
  %v329 = vpow.pop %v328
  %v330 = vadd.f32 %v329, 1.0
  %v331 = vrcp.pop %v330
  %v332 = vmul.f32 1.0, %v331
  %v333 = vtanh.pop %v326
  %v334 = vmul.f32 %v332, %v272
  %336 = vrot.lane.b32.xlu0 %v333, 64
  %v337 = vpop.permute.xlu0 %336
  %v339 = vmul.f32 %v332, %v337
  %341 = vrot.lane.b32.xlu0 %v339, 32
  %v342 = vpop.permute.xlu0 %341
  %v344 = vadd.f32 %v334, %v342
  %v345 = vtanh.pop %v344
  %347 = vrot.lane.b32.xlu0 %v345, 64
  %v348 = vpop.permute.xlu0 %347
  %v350 = vmul.f32 %v332, %v348
  %v351 = vpack.c.bf16 %v350, %v350
  %353 = vrot.lane.b32.xlu0 %v351, 32
  %v354 = vpop.permute.xlu0 %353
  %v356 = vsel %vm210, %v354, 0
  %358 = vmatprep.subr.bf16.mxu0 0
  %359 = vmatpush1.bf16.msra.mxu0 0
  %360 = vmatprep.subr.bf16.mxu0 0
  %361 = vmatpush1.bf16.msra.mxu0 0
  %362 = vmatprep.subr.bf16.mxu0 0
  %363 = vmatpush1.bf16.msra.mxu0 0
  %364 = vmatprep.subr.bf16.mxu0 0
  %365 = vmatpush1.bf16.msra.mxu0 0
  %366 = vmatprep.subr.bf16.mxu0 0
  %367 = vmatpush1.bf16.msra.mxu0 0
  %368 = vmatprep.subr.bf16.mxu0 0
  %369 = vmatpush1.bf16.msra.mxu0 0
  %370 = vmatprep.subr.bf16.mxu0 0
  %371 = vmatpush1.bf16.msra.mxu0 %v207
  %372 = vmatprep.subr.bf16.mxu0 0
  %373 = vmatpush1.bf16.msra.mxu0 %v206
  %374 = vmatprep.subr.bf16.mxu0 0
  %375 = vmatpush2.bf16.msra.mxu0 0
  %376 = vmatprep.subr.bf16.mxu0 0
  %377 = vmatpush2.bf16.msra.mxu0 0
  %378 = vmatprep.subr.bf16.mxu0 0
  %379 = vmatpush2.bf16.msra.mxu0 0
  %380 = vmatprep.subr.bf16.mxu0 0
  %381 = vmatpush2.bf16.msra.mxu0 0
  %382 = vmatprep.subr.bf16.mxu0 0
  %383 = vmatpush2.bf16.msra.mxu0 0
  %384 = vmatprep.subr.bf16.mxu0 0
  %385 = vmatpush2.bf16.msra.mxu0 0
  %386 = vmatprep.subr.bf16.mxu0 0
  %387 = vmatpush2.bf16.msra.mxu0 0
  %388 = vmatprep.subr.bf16.mxu0 0
  %389 = vmatpush2.bf16.msra.mxu0 0
  %390 = vmatprep.mubr.bf16.mxu0 0
  %391 = vmatmul.mubr.bf16.gmra.mxu0 %v356
  %v392 = vpop.f32.mrf.mxu0
  %v393 = vadd.f32 0.0, %v392
  %v394 = vpop.f32.mrf.mxu0
  %v395 = vpop.f32.mrf.mxu0
  %v396 = vpop.f32.mrf.mxu0
  %397 = vdwg.mxu0
  %v398 = vadd.f32 %v176, %v393
  %v399 = vxor.u32 %v398, 2147483648
  %v400 = vmul.f32 %v399, 1.442695
  %v401 = vpow.pop %v400
  %v402 = vadd.f32 %v401, 1.0
  %v403 = vrcp.pop %v402
  %v404 = vmul.f32 1.0, %v403
  %v405 = vtanh.pop %v398
  %v406 = vmul.f32 %v404, %v344
  %408 = vrot.lane.b32.xlu0 %v405, 64
  %v409 = vpop.permute.xlu0 %408
  %v411 = vmul.f32 %v404, %v409
  %413 = vrot.lane.b32.xlu0 %v411, 32
  %v414 = vpop.permute.xlu0 %413
  %v416 = vadd.f32 %v406, %v414
  %v417 = vtanh.pop %v416
  %419 = vrot.lane.b32.xlu0 %v417, 64
  %v420 = vpop.permute.xlu0 %419
  %v422 = vmul.f32 %v404, %v420
  %v423 = vpack.c.bf16 %v422, %v422
  %425 = vrot.lane.b32.xlu0 %v423, 32
  %v426 = vpop.permute.xlu0 %425
  %v428 = vsel %vm210, %v426, 0
  %430 = vmatprep.subr.bf16.mxu0 0
  %431 = vmatpush1.bf16.msra.mxu0 0
  %432 = vmatprep.subr.bf16.mxu0 0
  %433 = vmatpush1.bf16.msra.mxu0 0
  %434 = vmatprep.subr.bf16.mxu0 0
  %435 = vmatpush1.bf16.msra.mxu0 0
  %436 = vmatprep.subr.bf16.mxu0 0
  %437 = vmatpush1.bf16.msra.mxu0 0
  %438 = vmatprep.subr.bf16.mxu0 0
  %439 = vmatpush1.bf16.msra.mxu0 0
  %440 = vmatprep.subr.bf16.mxu0 0
  %441 = vmatpush1.bf16.msra.mxu0 0
  %442 = vmatprep.subr.bf16.mxu0 0
  %443 = vmatpush1.bf16.msra.mxu0 %v207
  %444 = vmatprep.subr.bf16.mxu0 0
  %445 = vmatpush1.bf16.msra.mxu0 %v206
  %446 = vmatprep.subr.bf16.mxu0 0
  %447 = vmatpush2.bf16.msra.mxu0 0
  %448 = vmatprep.subr.bf16.mxu0 0
  %449 = vmatpush2.bf16.msra.mxu0 0
  %450 = vmatprep.subr.bf16.mxu0 0
  %451 = vmatpush2.bf16.msra.mxu0 0
  %452 = vmatprep.subr.bf16.mxu0 0
  %453 = vmatpush2.bf16.msra.mxu0 0
  %454 = vmatprep.subr.bf16.mxu0 0
  %455 = vmatpush2.bf16.msra.mxu0 0
  %456 = vmatprep.subr.bf16.mxu0 0
  %457 = vmatpush2.bf16.msra.mxu0 0
  %458 = vmatprep.subr.bf16.mxu0 0
  %459 = vmatpush2.bf16.msra.mxu0 0
  %460 = vmatprep.subr.bf16.mxu0 0
  %461 = vmatpush2.bf16.msra.mxu0 0
  %462 = vmatprep.mubr.bf16.mxu0 0
  %463 = vmatmul.mubr.bf16.gmra.mxu0 %v428
  %v464 = vpop.f32.mrf.mxu0
  %v465 = vadd.f32 0.0, %v464
  %v466 = vpop.f32.mrf.mxu0
  %v467 = vpop.f32.mrf.mxu0
  %v468 = vpop.f32.mrf.mxu0
  %469 = vdwg.mxu0
  %v470 = vadd.f32 %v179, %v465
  %v471 = vxor.u32 %v470, 2147483648
  %v472 = vmul.f32 %v471, 1.442695
  %v473 = vpow.pop %v472
  %v474 = vadd.f32 %v473, 1.0
  %v475 = vrcp.pop %v474
  %v476 = vmul.f32 1.0, %v475
  %v477 = vtanh.pop %v470
  %v478 = vmul.f32 %v476, %v416
  %480 = vrot.lane.b32.xlu0 %v477, 64
  %v481 = vpop.permute.xlu0 %480
  %v483 = vmul.f32 %v476, %v481
  %485 = vrot.lane.b32.xlu0 %v483, 32
  %v486 = vpop.permute.xlu0 %485
  %v488 = vadd.f32 %v478, %v486
  %v489 = vtanh.pop %v488
  %491 = vrot.lane.b32.xlu0 %v489, 64
  %v492 = vpop.permute.xlu0 %491
  %v494 = vmul.f32 %v476, %v492
  %v495 = vpack.c.bf16 %v494, %v494
  %497 = vrot.lane.b32.xlu0 %v495, 32
  %v498 = vpop.permute.xlu0 %497
  %v500 = vsel %vm210, %v498, 0
  %502 = vmatprep.subr.bf16.mxu0 0
  %503 = vmatpush1.bf16.msra.mxu0 0
  %504 = vmatprep.subr.bf16.mxu0 0
  %505 = vmatpush1.bf16.msra.mxu0 0
  %506 = vmatprep.subr.bf16.mxu0 0
  %507 = vmatpush1.bf16.msra.mxu0 0
  %508 = vmatprep.subr.bf16.mxu0 0
  %509 = vmatpush1.bf16.msra.mxu0 0
  %510 = vmatprep.subr.bf16.mxu0 0
  %511 = vmatpush1.bf16.msra.mxu0 0
  %512 = vmatprep.subr.bf16.mxu0 0
  %513 = vmatpush1.bf16.msra.mxu0 0
  %514 = vmatprep.subr.bf16.mxu0 0
  %515 = vmatpush1.bf16.msra.mxu0 %v207
  %516 = vmatprep.subr.bf16.mxu0 0
  %517 = vmatpush1.bf16.msra.mxu0 %v206
  %518 = vmatprep.subr.bf16.mxu0 0
  %519 = vmatpush2.bf16.msra.mxu0 0
  %520 = vmatprep.subr.bf16.mxu0 0
  %521 = vmatpush2.bf16.msra.mxu0 0
  %522 = vmatprep.subr.bf16.mxu0 0
  %523 = vmatpush2.bf16.msra.mxu0 0
  %524 = vmatprep.subr.bf16.mxu0 0
  %525 = vmatpush2.bf16.msra.mxu0 0
  %526 = vmatprep.subr.bf16.mxu0 0
  %527 = vmatpush2.bf16.msra.mxu0 0
  %528 = vmatprep.subr.bf16.mxu0 0
  %529 = vmatpush2.bf16.msra.mxu0 0
  %530 = vmatprep.subr.bf16.mxu0 0
  %531 = vmatpush2.bf16.msra.mxu0 0
  %532 = vmatprep.subr.bf16.mxu0 0
  %533 = vmatpush2.bf16.msra.mxu0 0
  %534 = vmatprep.mubr.bf16.mxu0 0
  %535 = vmatmul.mubr.bf16.gmra.mxu0 %v500
  %v536 = vpop.f32.mrf.mxu0
  %v537 = vadd.f32 0.0, %v536
  %v538 = vpop.f32.mrf.mxu0
  %v539 = vpop.f32.mrf.mxu0
  %v540 = vpop.f32.mrf.mxu0
  %541 = vdwg.mxu0
  %v542 = vadd.f32 %v184, %v537
  %v543 = vxor.u32 %v542, 2147483648
  %v544 = vmul.f32 %v543, 1.442695
  %v545 = vpow.pop %v544
  %v546 = vadd.f32 %v545, 1.0
  %v547 = vrcp.pop %v546
  %v548 = vmul.f32 1.0, %v547
  %v549 = vtanh.pop %v542
  %v550 = vmul.f32 %v548, %v488
  %552 = vrot.lane.b32.xlu0 %v549, 64
  %v553 = vpop.permute.xlu0 %552
  %v555 = vmul.f32 %v548, %v553
  %557 = vrot.lane.b32.xlu0 %v555, 32
  %v558 = vpop.permute.xlu0 %557
  %v560 = vadd.f32 %v550, %v558
  %v561 = vtanh.pop %v560
  %563 = vrot.lane.b32.xlu0 %v561, 64
  %v564 = vpop.permute.xlu0 %563
  %v566 = vmul.f32 %v548, %v564
  %v567 = vpack.c.bf16 %v566, %v566
  %569 = vrot.lane.b32.xlu0 %v567, 32
  %v570 = vpop.permute.xlu0 %569
  %v572 = vsel %vm210, %v570, 0
  %574 = vmatprep.subr.bf16.mxu0 0
  %575 = vmatpush1.bf16.msra.mxu0 0
  %576 = vmatprep.subr.bf16.mxu0 0
  %577 = vmatpush1.bf16.msra.mxu0 0
  %578 = vmatprep.subr.bf16.mxu0 0
  %579 = vmatpush1.bf16.msra.mxu0 0
  %580 = vmatprep.subr.bf16.mxu0 0
  %581 = vmatpush1.bf16.msra.mxu0 0
  %582 = vmatprep.subr.bf16.mxu0 0
  %583 = vmatpush1.bf16.msra.mxu0 0
  %584 = vmatprep.subr.bf16.mxu0 0
  %585 = vmatpush1.bf16.msra.mxu0 0
  %586 = vmatprep.subr.bf16.mxu0 0
  %587 = vmatpush1.bf16.msra.mxu0 %v207
  %588 = vmatprep.subr.bf16.mxu0 0
  %589 = vmatpush1.bf16.msra.mxu0 %v206
  %590 = vmatprep.subr.bf16.mxu0 0
  %591 = vmatpush2.bf16.msra.mxu0 0
  %592 = vmatprep.subr.bf16.mxu0 0
  %593 = vmatpush2.bf16.msra.mxu0 0
  %594 = vmatprep.subr.bf16.mxu0 0
  %595 = vmatpush2.bf16.msra.mxu0 0
  %596 = vmatprep.subr.bf16.mxu0 0
  %597 = vmatpush2.bf16.msra.mxu0 0
  %598 = vmatprep.subr.bf16.mxu0 0
  %599 = vmatpush2.bf16.msra.mxu0 0
  %600 = vmatprep.subr.bf16.mxu0 0
  %601 = vmatpush2.bf16.msra.mxu0 0
  %602 = vmatprep.subr.bf16.mxu0 0
  %603 = vmatpush2.bf16.msra.mxu0 0
  %604 = vmatprep.subr.bf16.mxu0 0
  %605 = vmatpush2.bf16.msra.mxu0 0
  %606 = vmatprep.mubr.bf16.mxu0 0
  %607 = vmatmul.mubr.bf16.gmra.mxu0 %v572
  %v608 = vpop.f32.mrf.mxu0
  %v609 = vadd.f32 0.0, %v608
  %v610 = vpop.f32.mrf.mxu0
  %v611 = vpop.f32.mrf.mxu0
  %v612 = vpop.f32.mrf.mxu0
  %613 = vdwg.mxu0
  %v614 = vadd.f32 %v187, %v609
  %v615 = vxor.u32 %v614, 2147483648
  %v616 = vmul.f32 %v615, 1.442695
  %v617 = vpow.pop %v616
  %v618 = vadd.f32 %v617, 1.0
  %v619 = vrcp.pop %v618
  %v620 = vmul.f32 1.0, %v619
  %v621 = vtanh.pop %v614
  %v622 = vmul.f32 %v620, %v560
  %624 = vrot.lane.b32.xlu0 %v621, 64
  %v625 = vpop.permute.xlu0 %624
  %v627 = vmul.f32 %v620, %v625
  %629 = vrot.lane.b32.xlu0 %v627, 32
  %v630 = vpop.permute.xlu0 %629
  %v632 = vadd.f32 %v622, %v630
  %v633 = vtanh.pop %v632
  %635 = vrot.lane.b32.xlu0 %v633, 64
  %v636 = vpop.permute.xlu0 %635
  %v638 = vmul.f32 %v620, %v636
  %v639 = vpack.c.bf16 %v638, %v638
  %641 = vrot.lane.b32.xlu0 %v639, 32
  %v642 = vpop.permute.xlu0 %641
  %v644 = vsel %vm210, %v642, 0
  %646 = vmatprep.subr.bf16.mxu0 0
  %647 = vmatpush1.bf16.msra.mxu0 0
  %648 = vmatprep.subr.bf16.mxu0 0
  %649 = vmatpush1.bf16.msra.mxu0 0
  %650 = vmatprep.subr.bf16.mxu0 0
  %651 = vmatpush1.bf16.msra.mxu0 0
  %652 = vmatprep.subr.bf16.mxu0 0
  %653 = vmatpush1.bf16.msra.mxu0 0
  %654 = vmatprep.subr.bf16.mxu0 0
  %655 = vmatpush1.bf16.msra.mxu0 0
  %656 = vmatprep.subr.bf16.mxu0 0
  %657 = vmatpush1.bf16.msra.mxu0 0
  %658 = vmatprep.subr.bf16.mxu0 0
  %659 = vmatpush1.bf16.msra.mxu0 %v207
  %660 = vmatprep.subr.bf16.mxu0 0
  %661 = vmatpush1.bf16.msra.mxu0 %v206
  %662 = vmatprep.subr.bf16.mxu0 0
  %663 = vmatpush2.bf16.msra.mxu0 0
  %664 = vmatprep.subr.bf16.mxu0 0
  %665 = vmatpush2.bf16.msra.mxu0 0
  %666 = vmatprep.subr.bf16.mxu0 0
  %667 = vmatpush2.bf16.msra.mxu0 0
  %668 = vmatprep.subr.bf16.mxu0 0
  %669 = vmatpush2.bf16.msra.mxu0 0
  %670 = vmatprep.subr.bf16.mxu0 0
  %671 = vmatpush2.bf16.msra.mxu0 0
  %672 = vmatprep.subr.bf16.mxu0 0
  %673 = vmatpush2.bf16.msra.mxu0 0
  %674 = vmatprep.subr.bf16.mxu0 0
  %675 = vmatpush2.bf16.msra.mxu0 0
  %676 = vmatprep.subr.bf16.mxu0 0
  %677 = vmatpush2.bf16.msra.mxu0 0
  %678 = vmatprep.mubr.bf16.mxu0 0
  %679 = vmatmul.mubr.bf16.gmra.mxu0 %v644
  %v680 = vpop.f32.mrf.mxu0
  %v681 = vadd.f32 0.0, %v680
  %v682 = vpop.f32.mrf.mxu0
  %v683 = vpop.f32.mrf.mxu0
  %v684 = vpop.f32.mrf.mxu0
  %685 = vdwg.mxu0
  %v686 = vadd.f32 %v192, %v681
  %v687 = vxor.u32 %v686, 2147483648
  %v688 = vmul.f32 %v687, 1.442695
  %v689 = vpow.pop %v688
  %v690 = vadd.f32 %v689, 1.0
  %v691 = vrcp.pop %v690
  %v692 = vmul.f32 1.0, %v691
  %v693 = vtanh.pop %v686
  %v694 = vmul.f32 %v692, %v632
  %696 = vrot.lane.b32.xlu0 %v693, 64
  %v697 = vpop.permute.xlu0 %696
  %v699 = vmul.f32 %v692, %v697
  %701 = vrot.lane.b32.xlu0 %v699, 32
  %v702 = vpop.permute.xlu0 %701
  %v704 = vadd.f32 %v694, %v702
  %v705 = vtanh.pop %v704
  %707 = vrot.lane.b32.xlu0 %v705, 64
  %v708 = vpop.permute.xlu0 %707
  %v710 = vmul.f32 %v692, %v708
  %v711 = vpack.c.bf16 %v710, %v710
  %713 = vrot.lane.b32.xlu0 %v711, 32
  %v714 = vpop.permute.xlu0 %713
  %v716 = vsel %vm210, %v714, 0
  %718 = vmatprep.subr.bf16.mxu0 0
  %719 = vmatpush1.bf16.msra.mxu0 0
  %720 = vmatprep.subr.bf16.mxu0 0
  %721 = vmatpush1.bf16.msra.mxu0 0
  %722 = vmatprep.subr.bf16.mxu0 0
  %723 = vmatpush1.bf16.msra.mxu0 0
  %724 = vmatprep.subr.bf16.mxu0 0
  %725 = vmatpush1.bf16.msra.mxu0 0
  %726 = vmatprep.subr.bf16.mxu0 0
  %727 = vmatpush1.bf16.msra.mxu0 0
  %728 = vmatprep.subr.bf16.mxu0 0
  %729 = vmatpush1.bf16.msra.mxu0 0
  %730 = vmatprep.subr.bf16.mxu0 0
  %731 = vmatpush1.bf16.msra.mxu0 %v207
  %732 = vmatprep.subr.bf16.mxu0 0
  %733 = vmatpush1.bf16.msra.mxu0 %v206
  %734 = vmatprep.subr.bf16.mxu0 0
  %735 = vmatpush2.bf16.msra.mxu0 0
  %736 = vmatprep.subr.bf16.mxu0 0
  %737 = vmatpush2.bf16.msra.mxu0 0
  %738 = vmatprep.subr.bf16.mxu0 0
  %739 = vmatpush2.bf16.msra.mxu0 0
  %740 = vmatprep.subr.bf16.mxu0 0
  %741 = vmatpush2.bf16.msra.mxu0 0
  %742 = vmatprep.subr.bf16.mxu0 0
  %743 = vmatpush2.bf16.msra.mxu0 0
  %744 = vmatprep.subr.bf16.mxu0 0
  %745 = vmatpush2.bf16.msra.mxu0 0
  %746 = vmatprep.subr.bf16.mxu0 0
  %747 = vmatpush2.bf16.msra.mxu0 0
  %748 = vmatprep.subr.bf16.mxu0 0
  %749 = vmatpush2.bf16.msra.mxu0 0
  %750 = vmatprep.mubr.bf16.mxu0 0
  %751 = vmatmul.mubr.bf16.gmra.mxu0 %v716
  %v752 = vpop.f32.mrf.mxu0
  %v753 = vadd.f32 0.0, %v752
  %v754 = vpop.f32.mrf.mxu0
  %v755 = vpop.f32.mrf.mxu0
  %v756 = vpop.f32.mrf.mxu0
  %757 = vdwg.mxu0
  %v758 = vadd.f32 %v195, %v753
  %v759 = vxor.u32 %v758, 2147483648
  %v760 = vmul.f32 %v759, 1.442695
  %v761 = vpow.pop %v760
  %v762 = vadd.f32 %v761, 1.0
  %v763 = vrcp.pop %v762
  %v764 = vmul.f32 1.0, %v763
  %v765 = vtanh.pop %v758
  %v766 = vmul.f32 %v764, %v704
  %768 = vrot.lane.b32.xlu0 %v765, 64
  %v769 = vpop.permute.xlu0 %768
  %v771 = vmul.f32 %v764, %v769
  %773 = vrot.lane.b32.xlu0 %v771, 32
  %v774 = vpop.permute.xlu0 %773
  %v776 = vadd.f32 %v766, %v774
  %v777 = vtanh.pop %v776
  %779 = vrot.lane.b32.xlu0 %v777, 64
  %v780 = vpop.permute.xlu0 %779
  %v782 = vmul.f32 %v764, %v780
  %v783 = vlaneseq
  %v784 = vand.u32 %v783, 127
  %vm785 = vcmp.lt.s32.totalorder %v784, 16
  %787 = vrot.lane.b32.xlu0 %v278, 32
  %v788 = vpop.permute.xlu0 %787
  %791 = vrot.lane.b32.xlu0 %v782, 32
  %v792 = vpop.permute.xlu0 %791
  %v794 = vsel %vm785, %v788, %v792
  %795 = vst.msk [vmem:[#allocation2] sm:$0xff] %vm210, %v794
  %797 = vrot.lane.b32.xlu0 %v350, 32
  %v798 = vpop.permute.xlu0 %797
  %801 = vrot.lane.b32.xlu0 %v710, 32
  %v802 = vpop.permute.xlu0 %801
  %v804 = vsel %vm785, %v798, %v802
  %s805 = scalar_lea.vmem [#allocation2], 8
  %806 = vst.msk [vmem:[%s805] sm:$0xff] %vm210, %v804
  %808 = vrot.lane.b32.xlu0 %v422, 32
  %v809 = vpop.permute.xlu0 %808
  %812 = vrot.lane.b32.xlu0 %v638, 32
  %v813 = vpop.permute.xlu0 %812
  %v815 = vsel %vm785, %v809, %v813
  %s816 = scalar_lea.vmem [#allocation2], 16
  %817 = vst.msk [vmem:[%s816] sm:$0xff] %vm210, %v815
  %819 = vrot.lane.b32.xlu0 %v494, 32
  %v820 = vpop.permute.xlu0 %819
  %823 = vrot.lane.b32.xlu0 %v566, 32
  %v824 = vpop.permute.xlu0 %823
  %v826 = vsel %vm785, %v820, %v824
  %s827 = scalar_lea.vmem [#allocation2], 24
  %828 = vst.msk [vmem:[%s827] sm:$0xff] %vm210, %v826
  %v829 = vsel %vm785, %v824, %v820
  %s830 = scalar_lea.vmem [#allocation2], 32
  %831 = vst.msk [vmem:[%s830] sm:$0xff] %vm210, %v829
  %v832 = vsel %vm785, %v813, %v809
  %s833 = scalar_lea.vmem [#allocation2], 40
  %834 = vst.msk [vmem:[%s833] sm:$0xff] %vm210, %v832
  %v835 = vsel %vm785, %v802, %v798
  %s836 = scalar_lea.vmem [#allocation2], 48
  %837 = vst.msk [vmem:[%s836] sm:$0xff] %vm210, %v835
  %v838 = vsel %vm785, %v792, %v788
  %s839 = scalar_lea.vmem [#allocation2], 56
  %840 = vst.msk [vmem:[%s839] sm:$0xff] %vm210, %v838
  %v841 = vld [vmem:[#allocation2] sm:$0xff]
  %v842 = vld [vmem:[#allocation2 + $0x8] sm:$0xff]
  %v843 = vld [vmem:[#allocation2 + $0x10] sm:$0xff]
  %v844 = vld [vmem:[#allocation2 + $0x18] sm:$0xff]
  %v845 = vld [vmem:[#allocation2 + $0x20] sm:$0xff]
  %v846 = vld [vmem:[#allocation2 + $0x28] sm:$0xff]
  %v847 = vld [vmem:[#allocation2 + $0x30] sm:$0xff]
  %v848 = vld [vmem:[#allocation2 + $0x38] sm:$0xff]
  %v849 = vpack.c.bf16 %v842, %v841
  %v850 = vpack.c.bf16 %v844, %v843
  %v851 = vpack.c.bf16 %v846, %v845
  %v852 = vpack.c.bf16 %v848, %v847
  %v854 = vlaneseq
  %v855 = vshrl.u32 %v854, 7
  %v856 = vsub.s32 0, %v855
  %v857 = vrot.slane %v55, %v856
  %v863 = vunpack.c.l.b16 %v51
  %v864 = vunpack.c.l.b16 %v52
  %v865 = vunpack.c.l.b16 %v53
  %v866 = vunpack.c.l.b16 %v54
  %v867 = vpack.c.b16 %v864, %v863
  %v868 = vpack.c.b16 %v866, %v865
  %v872 = vsel %vm210, %v849, 0
  %v875 = vsel %vm210, %v850, 0
  %v878 = vsel %vm210, %v851, 0
  %v881 = vsel %vm210, %v852, 0
  %883 = vmatprep.subr.bf16.mxu0 0
  %884 = vmatpush1.bf16.msra.mxu0 0
  %885 = vmatprep.subr.bf16.mxu0 0
  %886 = vmatpush1.bf16.msra.mxu0 0
  %887 = vmatprep.subr.bf16.mxu0 0
  %888 = vmatpush1.bf16.msra.mxu0 0
  %889 = vmatprep.subr.bf16.mxu0 0
  %890 = vmatpush1.bf16.msra.mxu0 0
  %891 = vmatprep.subr.bf16.mxu0 0
  %892 = vmatpush1.bf16.msra.mxu0 0
  %893 = vmatprep.subr.bf16.mxu0 0
  %894 = vmatpush1.bf16.msra.mxu0 0
  %895 = vmatprep.subr.bf16.mxu0 0
  %896 = vmatpush1.bf16.msra.mxu0 %v868
  %897 = vmatprep.subr.bf16.mxu0 0
  %898 = vmatpush1.bf16.msra.mxu0 %v867
  %899 = vmatprep.subr.bf16.mxu0 0
  %900 = vmatpush2.bf16.msra.mxu0 0
  %901 = vmatprep.subr.bf16.mxu0 0
  %902 = vmatpush2.bf16.msra.mxu0 0
  %903 = vmatprep.subr.bf16.mxu0 0
  %904 = vmatpush2.bf16.msra.mxu0 0
  %905 = vmatprep.subr.bf16.mxu0 0
  %906 = vmatpush2.bf16.msra.mxu0 0
  %907 = vmatprep.subr.bf16.mxu0 0
  %908 = vmatpush2.bf16.msra.mxu0 0
  %909 = vmatprep.subr.bf16.mxu0 0
  %910 = vmatpush2.bf16.msra.mxu0 0
  %911 = vmatprep.subr.bf16.mxu0 0
  %912 = vmatpush2.bf16.msra.mxu0 0
  %913 = vmatprep.subr.bf16.mxu0 0
  %914 = vmatpush2.bf16.msra.mxu0 0
  %915 = vmatprep.mubr.bf16.mxu0 0
  %916 = vmatmul.mubr.bf16.gmra.mxu0 %v872
  %v917 = vpop.f32.mrf.mxu0
  %v918 = vadd.f32 %v857, %v917
  %v919 = vpop.f32.mrf.mxu0
  %v920 = vpop.f32.mrf.mxu0
  %v921 = vadd.f32 %v857, %v920
  %v922 = vpop.f32.mrf.mxu0
  %923 = vmatprep.mubr.bf16.mxu0 0
  %924 = vmatmul.mubr.bf16.gmra.mxu0 %v875
  %v925 = vpop.f32.mrf.mxu0
  %v926 = vadd.f32 %v857, %v925
  %v927 = vpop.f32.mrf.mxu0
  %v928 = vpop.f32.mrf.mxu0
  %v929 = vadd.f32 %v857, %v928
  %v930 = vpop.f32.mrf.mxu0
  %931 = vmatprep.mubr.bf16.mxu0 0
  %932 = vmatmul.mubr.bf16.gmra.mxu0 %v878
  %v933 = vpop.f32.mrf.mxu0
  %v934 = vadd.f32 %v857, %v933
  %v935 = vpop.f32.mrf.mxu0
  %v936 = vpop.f32.mrf.mxu0
  %v937 = vadd.f32 %v857, %v936
  %v938 = vpop.f32.mrf.mxu0
  %939 = vmatprep.mubr.bf16.mxu0 0
  %940 = vmatmul.mubr.bf16.gmra.mxu0 %v881
  %v941 = vpop.f32.mrf.mxu0
  %v942 = vadd.f32 %v857, %v941
  %v943 = vpop.f32.mrf.mxu0
  %v944 = vpop.f32.mrf.mxu0
  %v945 = vadd.f32 %v857, %v944
  %v946 = vpop.f32.mrf.mxu0
  %947 = vdwg.mxu0
  %v948 = vtanh.pop %v918
  %v949 = vtanh.pop %v921
  %v950 = vtanh.pop %v926
  %v951 = vtanh.pop %v929
  %v952 = vtanh.pop %v934
  %v953 = vtanh.pop %v937
  %v954 = vtanh.pop %v942
  %v955 = vtanh.pop %v945
  %v957 = vlaneseq
  %v958 = vshrl.u32 %v957, 7
  %v959 = vsub.s32 0, %v958
  %v960 = vrot.slane %v56, %v959
  %v962 = vmul.f32 %v948, %v960
  %v963 = vmul.f32 %v949, %v960
  %v964 = vmul.f32 %v950, %v960
  %v965 = vmul.f32 %v951, %v960
  %v966 = vmul.f32 %v952, %v960
  %v967 = vmul.f32 %v953, %v960
  %v968 = vmul.f32 %v954, %v960
  %v969 = vmul.f32 %v955, %v960
  %v970 = vsel %vm210, %v962, 0.0
  %971 = vadd.xlane.f32.xlu0 %v970
  %v972 = vpop.xlane.xlu0 %971
  %v973 = vsel %vm210, %v963, 0.0
  %974 = vadd.xlane.f32.xlu0 %v973
  %v975 = vpop.xlane.xlu0 %974
  %v976 = vsel %vm210, %v964, 0.0
  %977 = vadd.xlane.f32.xlu0 %v976
  %v978 = vpop.xlane.xlu0 %977
  %v979 = vsel %vm210, %v965, 0.0
  %980 = vadd.xlane.f32.xlu0 %v979
  %v981 = vpop.xlane.xlu0 %980
  %v982 = vsel %vm210, %v966, 0.0
  %983 = vadd.xlane.f32.xlu0 %v982
  %v984 = vpop.xlane.xlu0 %983
  %v985 = vsel %vm210, %v967, 0.0
  %986 = vadd.xlane.f32.xlu0 %v985
  %v987 = vpop.xlane.xlu0 %986
  %v988 = vsel %vm210, %v968, 0.0
  %989 = vadd.xlane.f32.xlu0 %v988
  %v990 = vpop.xlane.xlu0 %989
  %v991 = vsel %vm210, %v969, 0.0
  %992 = vadd.xlane.f32.xlu0 %v991
  %v993 = vpop.xlane.xlu0 %992
  %v994 = vld [vmem:[%s1] sm:$0xff]
  %vm995 = vcmp.gt.f32.partialorder %v994, 0.0
  %v1004 = vlaneseq
  %v1005 = vshrl.u32 %v1004, 7
  %v1006 = vsub.s32 %v784, %v1005
  %v1007 = vrot.slane %v972, %v1006
  %v1008 = vlaneseq
  %v1009 = vshrl.u32 %v1008, 7
  %v1010 = vsub.s32 %v784, %v1009
  %v1011 = vrot.slane %v975, %v1010
  %v1012 = vlaneseq
  %v1013 = vshrl.u32 %v1012, 7
  %v1014 = vsub.s32 %v784, %v1013
  %v1015 = vrot.slane %v978, %v1014
  %v1016 = vlaneseq
  %v1017 = vshrl.u32 %v1016, 7
  %v1018 = vsub.s32 %v784, %v1017
  %v1019 = vrot.slane %v981, %v1018
  %v1020 = vlaneseq
  %v1021 = vshrl.u32 %v1020, 7
  %v1022 = vsub.s32 %v784, %v1021
  %v1023 = vrot.slane %v984, %v1022
  %v1024 = vlaneseq
  %v1025 = vshrl.u32 %v1024, 7
  %v1026 = vsub.s32 %v784, %v1025
  %v1027 = vrot.slane %v987, %v1026
  %v1028 = vlaneseq
  %v1029 = vshrl.u32 %v1028, 7
  %v1030 = vsub.s32 %v784, %v1029
  %v1031 = vrot.slane %v990, %v1030
  %v1032 = vlaneseq
  %v1033 = vshrl.u32 %v1032, 7
  %v1034 = vsub.s32 %v784, %v1033
  %v1035 = vrot.slane %v993, %v1034
  %vm1036 = vcmask 1041409
  %v1037 = vsel %vm1036, %v1011, %v1007
  %vm1038 = vcmask 1042434
  %v1039 = vsel %vm1038, %v1015, %v1037
  %vm1040 = vcmask 1043459
  %v1041 = vsel %vm1040, %v1019, %v1039
  %vm1042 = vcmask 1044484
  %v1043 = vsel %vm1042, %v1023, %v1041
  %vm1044 = vcmask 1045509
  %v1045 = vsel %vm1044, %v1027, %v1043
  %vm1046 = vcmask 1046534
  %v1047 = vsel %vm1046, %v1031, %v1045
  %vm1048 = vcmask 1047559
  %v1049 = vsel %vm1048, %v1035, %v1047
  %v1051 = vsel %vm995, %v1049, -1e+09
  %vm1052 = vcmask 64512
  %v1053 = vsel %vm1052, %v1051, -inf
  %v1054 = vrot.slane %v1053, 4
  %v1055 = vmax.f32 %v1053, %v1054
  %v1056 = vrot.slane %v1055, 2
  %v1057 = vmax.f32 %v1055, %v1056
  %v1058 = vrot.slane %v1057, 1
  %v1059 = vmax.f32 %v1057, %v1058
  %v1060 = vsub.f32 %v1051, %v1059
  %v1061 = vmul.f32 %v1060, 1.442695
  %v1062 = vpow.pop %v1061
  %v1063 = vsel %vm1052, %v1062, 0.0
  %v1064 = vrot.slane %v1063, 4
  %v1065 = vadd.f32 %v1063, %v1064
  %v1066 = vrot.slane %v1065, 2
  %v1067 = vadd.f32 %v1065, %v1066
  %v1068 = vrot.slane %v1067, 1
  %v1069 = vadd.f32 %v1067, %v1068
  %v1070 = vrcp.pop %v1069
  %v1071 = vmul.f32 %v1062, %v1070
  %v1072 = vlaneseq
  %v1073 = vshrl.u32 %v1072, 7
  %v1074 = vsub.s32 0, %v1073
  %v1075 = vrot.slane %v1071, %v1074
  %1077 = vbcast.lane.b32.xlu0 %v1075, 256
  %v1078 = vpop.permute.xlu0 %1077
  %v1079 = vlaneseq
  %v1080 = vshrl.u32 %v1079, 7
  %v1081 = vsub.s32 1, %v1080
  %v1082 = vrot.slane %v1071, %v1081
  %1084 = vbcast.lane.b32.xlu0 %v1082, 256
  %v1085 = vpop.permute.xlu0 %1084
  %v1086 = vlaneseq
  %v1087 = vshrl.u32 %v1086, 7
  %v1088 = vsub.s32 2, %v1087
  %v1089 = vrot.slane %v1071, %v1088
  %1091 = vbcast.lane.b32.xlu0 %v1089, 256
  %v1092 = vpop.permute.xlu0 %1091
  %v1093 = vlaneseq
  %v1094 = vshrl.u32 %v1093, 7
  %v1095 = vsub.s32 3, %v1094
  %v1096 = vrot.slane %v1071, %v1095
  %1098 = vbcast.lane.b32.xlu0 %v1096, 256
  %v1099 = vpop.permute.xlu0 %1098
  %v1100 = vlaneseq
  %v1101 = vshrl.u32 %v1100, 7
  %v1102 = vsub.s32 4, %v1101
  %v1103 = vrot.slane %v1071, %v1102
  %1105 = vbcast.lane.b32.xlu0 %v1103, 256
  %v1106 = vpop.permute.xlu0 %1105
  %v1107 = vlaneseq
  %v1108 = vshrl.u32 %v1107, 7
  %v1109 = vsub.s32 5, %v1108
  %v1110 = vrot.slane %v1071, %v1109
  %1112 = vbcast.lane.b32.xlu0 %v1110, 256
  %v1113 = vpop.permute.xlu0 %1112
  %v1114 = vlaneseq
  %v1115 = vshrl.u32 %v1114, 7
  %v1116 = vsub.s32 6, %v1115
  %v1117 = vrot.slane %v1071, %v1116
  %1119 = vbcast.lane.b32.xlu0 %v1117, 256
  %v1120 = vpop.permute.xlu0 %1119
  %v1121 = vlaneseq
  %v1122 = vshrl.u32 %v1121, 7
  %v1123 = vsub.s32 7, %v1122
  %v1124 = vrot.slane %v1071, %v1123
  %1126 = vbcast.lane.b32.xlu0 %v1124, 256
  %v1127 = vpop.permute.xlu0 %1126
  %v1128 = vmul.f32 %v1078, %v841
  %v1129 = vmul.f32 %v1085, %v842
  %v1130 = vmul.f32 %v1092, %v843
  %v1131 = vmul.f32 %v1099, %v844
  %v1132 = vmul.f32 %v1106, %v845
  %v1133 = vmul.f32 %v1113, %v846
  %v1134 = vmul.f32 %v1120, %v847
  %v1135 = vmul.f32 %v1127, %v848
  %v1136 = vsel %vm210, %v1128, 0.0
  %v1137 = vsel %vm210, %v1129, 0.0
  %v1138 = vadd.f32 %v1136, %v1137
  %v1139 = vsel %vm210, %v1130, 0.0
  %v1140 = vadd.f32 %v1138, %v1139
  %v1141 = vsel %vm210, %v1131, 0.0
  %v1142 = vadd.f32 %v1140, %v1141
  %v1143 = vsel %vm210, %v1132, 0.0
  %v1144 = vadd.f32 %v1142, %v1143
  %v1145 = vsel %vm210, %v1133, 0.0
  %v1146 = vadd.f32 %v1144, %v1145
  %v1147 = vsel %vm210, %v1134, 0.0
  %v1148 = vadd.f32 %v1146, %v1147
  %v1149 = vsel %vm210, %v1135, 0.0
  %v1150 = vadd.f32 %v1148, %v1149
  %v1151 = vpack.c.bf16 %v1150, %v1150
  %v1153 = vlaneseq
  %v1154 = vshrl.u32 %v1153, 7
  %v1155 = vsub.s32 0, %v1154
  %v1156 = vrot.slane %v61, %v1155
  %v1162 = vunpack.c.l.b16 %v57
  %v1163 = vunpack.c.l.b16 %v58
  %v1164 = vunpack.c.l.b16 %v59
  %v1165 = vunpack.c.l.b16 %v60
  %v1166 = vpack.c.b16 %v1163, %v1162
  %v1167 = vpack.c.b16 %v1165, %v1164
  %v1171 = vsel %vm210, %v1151, 0
  %1173 = vmatprep.subr.bf16.mxu0 0
  %1174 = vmatpush1.bf16.msra.mxu0 0
  %1175 = vmatprep.subr.bf16.mxu0 0
  %1176 = vmatpush1.bf16.msra.mxu0 0
  %1177 = vmatprep.subr.bf16.mxu0 0
  %1178 = vmatpush1.bf16.msra.mxu0 0
  %1179 = vmatprep.subr.bf16.mxu0 0
  %1180 = vmatpush1.bf16.msra.mxu0 0
  %1181 = vmatprep.subr.bf16.mxu0 0
  %1182 = vmatpush1.bf16.msra.mxu0 0
  %1183 = vmatprep.subr.bf16.mxu0 0
  %1184 = vmatpush1.bf16.msra.mxu0 0
  %1185 = vmatprep.subr.bf16.mxu0 0
  %1186 = vmatpush1.bf16.msra.mxu0 %v1167
  %1187 = vmatprep.subr.bf16.mxu0 0
  %1188 = vmatpush1.bf16.msra.mxu0 %v1166
  %1189 = vmatprep.subr.bf16.mxu0 0
  %1190 = vmatpush2.bf16.msra.mxu0 0
  %1191 = vmatprep.subr.bf16.mxu0 0
  %1192 = vmatpush2.bf16.msra.mxu0 0
  %1193 = vmatprep.subr.bf16.mxu0 0
  %1194 = vmatpush2.bf16.msra.mxu0 0
  %1195 = vmatprep.subr.bf16.mxu0 0
  %1196 = vmatpush2.bf16.msra.mxu0 0
  %1197 = vmatprep.subr.bf16.mxu0 0
  %1198 = vmatpush2.bf16.msra.mxu0 0
  %1199 = vmatprep.subr.bf16.mxu0 0
  %1200 = vmatpush2.bf16.msra.mxu0 0
  %1201 = vmatprep.subr.bf16.mxu0 0
  %1202 = vmatpush2.bf16.msra.mxu0 0
  %1203 = vmatprep.subr.bf16.mxu0 0
  %1204 = vmatpush2.bf16.msra.mxu0 0
  %1205 = vmatprep.mubr.bf16.mxu0 0
  %1206 = vmatmul.mubr.bf16.gmra.mxu0 %v1171
  %v1207 = vpop.f32.mrf.mxu0
  %v1208 = vadd.f32 %v1156, %v1207
  %v1209 = vpop.f32.mrf.mxu0
  %v1210 = vpop.f32.mrf.mxu0
  %v1211 = vpop.f32.mrf.mxu0
  %1212 = vdwg.mxu0
  %vm1213 = vcmask 162816
  %1214 = vst.msk [vmem:[%s11] sm:$0xff] %vm1213, %v1208
  %vm1215 = vcmask 39936
  %v1216 = vsel %vm1215, %v1208, -inf
  %1217 = vmax.xlane.f32.xlu0 %v1216
  %v1218 = vpop.xlane.xlu0 %1217
  %v1219 = vsub.f32 %v1208, %v1218
  %v1220 = vmul.f32 %v1219, 1.442695
  %v1221 = vpow.pop %v1220
  %v1222 = vsel %vm1215, %v1221, 0.0
  %1223 = vadd.xlane.f32.xlu0 %v1222
  %v1224 = vpop.xlane.xlu0 %1223
  %v1225 = vrcp.pop %v1224
  %v1226 = vmul.f32 %v1221, %v1225
  %v1227 = vadd.f32 %v1226, 0.0
  %vm1228 = vcmask 80936
  %v1229 = vsel %vm1228, %v1208, -inf
  %1230 = vmax.xlane.f32.xlu0 %v1229
  %v1231 = vpop.xlane.xlu0 %1230
  %v1232 = vsub.f32 %v1208, %v1231
  %v1233 = vmul.f32 %v1232, 1.442695
  %v1234 = vpow.pop %v1233
  %1236 = vrot.lane.b32.xlu0 %v1234, 123
  %v1237 = vpop.permute.xlu0 %1236
  %v1239 = vsel %vm1215, %v1237, 0.0
  %1240 = vadd.xlane.f32.xlu0 %v1239
  %v1241 = vpop.xlane.xlu0 %1240
  %v1242 = vrcp.pop %v1241
  %v1243 = vmul.f32 %v1234, %v1242
  %1245 = vrot.lane.b32.xlu0 %v1243, 123
  %v1246 = vpop.permute.xlu0 %1245
  %v1248 = vadd.f32 %v1227, %v1246
  %vm1249 = vcmask 121936
  %v1250 = vsel %vm1249, %v1208, -inf
  %1251 = vmax.xlane.f32.xlu0 %v1250
  %v1252 = vpop.xlane.xlu0 %1251
  %v1253 = vsub.f32 %v1208, %v1252
  %v1254 = vmul.f32 %v1253, 1.442695
  %v1255 = vpow.pop %v1254
  %1257 = vrot.lane.b32.xlu0 %v1255, 118
  %v1258 = vpop.permute.xlu0 %1257
  %v1260 = vsel %vm1215, %v1258, 0.0
  %1261 = vadd.xlane.f32.xlu0 %v1260
  %v1262 = vpop.xlane.xlu0 %1261
  %v1263 = vrcp.pop %v1262
  %v1264 = vmul.f32 %v1255, %v1263
  %1266 = vrot.lane.b32.xlu0 %v1264, 118
  %v1267 = vpop.permute.xlu0 %1266
  %v1269 = vadd.f32 %v1248, %v1267
  %vm1270 = vcmask 162936
  %v1271 = vsel %vm1270, %v1208, -inf
  %1272 = vmax.xlane.f32.xlu0 %v1271
  %v1273 = vpop.xlane.xlu0 %1272
  %v1274 = vsub.f32 %v1208, %v1273
  %v1275 = vmul.f32 %v1274, 1.442695
  %v1276 = vpow.pop %v1275
  %1278 = vrot.lane.b32.xlu0 %v1276, 113
  %v1279 = vpop.permute.xlu0 %1278
  %v1281 = vsel %vm1215, %v1279, 0.0
  %1282 = vadd.xlane.f32.xlu0 %v1281
  %v1283 = vpop.xlane.xlu0 %1282
  %v1284 = vrcp.pop %v1283
  %v1285 = vmul.f32 %v1276, %v1284
  %1287 = vrot.lane.b32.xlu0 %v1285, 113
  %v1288 = vpop.permute.xlu0 %1287
  %v1290 = vadd.f32 %v1269, %v1288
  %v1291 = vmul.f32 %v1290, 0.25
  %1292 = vst.msk [vmem:[%s10] sm:$0xff] %vm1215, %v1291
  // Predicated region
  $region42: #{stochastic_classifier_forward.1} parent=0 // pred_check
    _
  $region43: #{stochastic_classifier_forward.1} parent=0 // pred_check_branch
    %1294 = sbr.rel (0) target = $region45
  $region44: #{stochastic_classifier_forward.1} parent=0 // pred_region
    _
  $region45: #{stochastic_classifier_forward.1} parent=0 // pred_fallthru
    _
  // Predicated region
  $region46: #{stochastic_classifier_forward.1} parent=0 // pred_check
    _
  $region47: #{stochastic_classifier_forward.1} parent=0 // pred_check_branch
    %1296 = sbr.rel (0) target = $region49
  $region48: #{stochastic_classifier_forward.1} parent=0 // pred_region
    _
  $region49: #{stochastic_classifier_forward.1} parent=0 // pred_fallthru
    _
  // Predicated region
  $region50: #{stochastic_classifier_forward.1} parent=0 // pred_check
    _
  $region51: #{stochastic_classifier_forward.1} parent=0 // pred_check_branch
    %1298 = sbr.rel (0) target = $region53
  $region52: #{stochastic_classifier_forward.1} parent=0 // pred_region
    _
  $region53: #{stochastic_classifier_forward.1} parent=0 // pred_fallthru
    _
  // Predicated region
  $region54: #{stochastic_classifier_forward.1} parent=0 // pred_check
    _
  $region55: #{stochastic_classifier_forward.1} parent=0 // pred_check_branch
    %1300 = sbr.rel (0) target = $region57
  $region56: #{stochastic_classifier_forward.1} parent=0 // pred_region
    _
  $region57: #{stochastic_classifier_forward.1} parent=0 // pred_fallthru
    _

</llo_original>
